<compile_context>
chip_gen: v5e
topology: v5e:2x2
jax: 0.10.0
libtpu: 0.0.40
codegen_flags: <defaults>
</compile_context>

<pallas_src>
import functools

import numpy as np

import jax
import jax.numpy as jnp
from jax.experimental import pallas as pl
from jax.experimental.pallas import tpu as pltpu

C0, C1, C2 = 3, 16, 32


# -----------------------------------------------------------------------------
# Fused kernel: conv1+BN+ReLU+pool -> conv2+BN+ReLU+pool -> linear
# -----------------------------------------------------------------------------
def _fused_model_kernel(xpad_ref, m1_ref, s1_ref, sel1_ref, m2_ref, s2_ref,
                        sel2_ref, wlcat_ref, mdiag_ref, gsum_ref, rowsum_ref,
                        bl_ref, o_ref, *, n_rows1, n_rows2, half1, half2):
    f32 = jnp.float32
    bf16 = jnp.bfloat16

    def conv_bn_relu_wpool(xpad, m_ref, s_row, n_out, half):
        # 3x3 conv = 3 matmuls (one per kernel row) against banded weights.
        # All B_blk images are stacked along the M dimension.
        acc = jnp.dot(xpad[0:n_out], m_ref[0], preferred_element_type=f32)
        acc = acc + jnp.dot(xpad[1:n_out + 1], m_ref[1],
                            preferred_element_type=f32)
        acc = acc + jnp.dot(xpad[2:n_out + 2], m_ref[2],
                            preferred_element_type=f32)
        y = jnp.maximum(acc + s_row, 0.0)                 # BN shift + ReLU (f32)
        # Width 2:1 max pool: columns pre-permuted (w-parity, w//2, cout), so
        # pooling is a lane-halving slice + max.
        return jnp.maximum(y[:, :half], y[:, half:]).astype(bf16)

    def hpool(sel_ref, yw):
        # Height 2:1 max pool via precomputed 0/1 row-selection matmuls; also
        # drops the junk rows between stacked images and re-inserts the zero
        # padding rows needed by the next conv layer.
        ev = jnp.dot(sel_ref[0], yw, preferred_element_type=f32)
        od = jnp.dot(sel_ref[1], yw, preferred_element_type=f32)
        return jnp.maximum(ev, od).astype(bf16)

    xpad = xpad_ref[...]                                  # (B_blk*(H+2), W*C0)
    yw1 = conv_bn_relu_wpool(xpad, m1_ref, s1_ref[...], n_rows1, half1)
    p1 = hpool(sel1_ref, yw1)            # padded, stacked layer-2 input (bf16)
    yw2 = conv_bn_relu_wpool(p1, m2_ref, s2_ref[...], n_rows2, half2)
    p2 = hpool(sel2_ref, yw2)            # (B_blk*H/4, (W/4)*C2), images stacked

    # Linear head: one K=(W/4)*C2 matmul over all pooled rows, then a per-row
    # diagonal selection (precomputed mask) and two tiny 0/1 reduction matmuls
    # (sum over output-column groups, per-image row sum).
    z = jnp.dot(p2, wlcat_ref[...], preferred_element_type=f32)
    zg = jnp.dot(z * mdiag_ref[...], gsum_ref[...], preferred_element_type=f32)
    out = jnp.dot(rowsum_ref[...], zg, preferred_element_type=f32)
    o_ref[...] = out + bl_ref[...]                        # (B_blk, 4)


# -----------------------------------------------------------------------------
# Offline parameter preparation (done once, outside the jitted forward)
# -----------------------------------------------------------------------------
def _banded_conv_weight(w_hwio, scale, W):
    """Per-kernel-row matmul matrices M[dy] (W*Cin, W*Cout) realizing a 3x3 /
    stride-1 / pad-1 conv along width (padding folded in as zero bands), with
    the BatchNorm scale folded in.  Output columns are permuted so even-w
    outputs occupy the first (W/2)*Cout columns and odd-w the rest, turning the
    width-wise 2:1 max pool into a plain lane slice."""
    _, _, cin, cout = w_hwio.shape
    wnp = (np.asarray(w_hwio, np.float32)
           * np.asarray(scale, np.float32)[None, None, None, :])
    half = (W // 2) * cout
    m = np.zeros((3, W * cin, W * cout), np.float32)
    for dx in range(3):
        for w in range(W):
            p = w + dx - 1                     # input column feeding output w
            if 0 <= p < W:
                q = (w % 2) * half + (w // 2) * cout
                m[:, p * cin:(p + 1) * cin, q:q + cout] = wnp[:, dx]
    return m


def _hpool_selectors(b_blk, h_in, h_out, pad_out):
    """0/1 selection matrices (2, rows_out, rows_in) realizing the height 2:1
    max pool over stacked per-image conv-output rows: even/odd row pick per
    image, removal of junk rows between images, and (if pad_out) insertion of
    zero padding rows for the next conv layer."""
    rows_in = b_blk * (h_in + 2) - 2
    per_out = h_out + 2 * pad_out
    sel = np.zeros((2, b_blk * per_out, rows_in), np.float32)
    for b in range(b_blk):
        for r in range(h_out):
            sel[0, b * per_out + pad_out + r, b * (h_in + 2) + 2 * r] = 1.0
            sel[1, b * per_out + pad_out + r, b * (h_in + 2) + 2 * r + 1] = 1.0
    return sel


def make_params(key, h_in, w_in, b_blk):
    """Random torch-layout parameters + precomputed kernel-ready tensors."""
    eps = 1e-5
    H2, W2 = h_in // 2, w_in // 2
    H4, W4 = h_in // 4, w_in // 4
    ks = jax.random.split(key, 10)

    raw = dict(
        w1=jax.random.normal(ks[0], (C1, C0, 3, 3), jnp.float32) * 0.1,   # OIHW
        b1=jax.random.normal(ks[1], (C1,), jnp.float32) * 0.1,
        g1=jax.random.uniform(ks[2], (C1,), jnp.float32, minval=0.5, maxval=1.5),
        beta1=jax.random.normal(ks[3], (C1,), jnp.float32) * 0.1,
        w2=jax.random.normal(ks[4], (C2, C1, 3, 3), jnp.float32) * 0.05,  # OIHW
        b2=jax.random.normal(ks[5], (C2,), jnp.float32) * 0.1,
        g2=jax.random.uniform(ks[6], (C2,), jnp.float32, minval=0.5, maxval=1.5),
        beta2=jax.random.normal(ks[7], (C2,), jnp.float32) * 0.1,
        wl=jax.random.normal(ks[8], (4, C2 * H4 * W4), jnp.float32) * 0.01,
        bl=jax.random.normal(ks[9], (4,), jnp.float32) * 0.1,
    )

    # Eval-mode BatchNorm (running_mean=0, running_var=1) folded to scale/shift.
    scale1 = np.asarray(raw["g1"]) / np.sqrt(1.0 + eps)
    shift1 = np.asarray(raw["beta1"]) + np.asarray(raw["b1"]) * scale1
    scale2 = np.asarray(raw["g2"]) / np.sqrt(1.0 + eps)
    shift2 = np.asarray(raw["beta2"]) + np.asarray(raw["b2"]) * scale2

    w1_hwio = np.transpose(np.asarray(raw["w1"]), (2, 3, 1, 0))
    w2_hwio = np.transpose(np.asarray(raw["w2"]), (2, 3, 1, 0))

    m1 = _banded_conv_weight(w1_hwio, scale1, w_in)      # (3, W*C0,  W*C1)
    m2 = _banded_conv_weight(w2_hwio, scale2, W2)        # (3, W2*C1, W2*C2)
    sel1 = _hpool_selectors(b_blk, h_in, H2, pad_out=1)
    sel2 = _hpool_selectors(b_blk, H2, H4, pad_out=0)

    # Linear head. torch flattens NCHW (c, r, w4); kernel p2 columns are (w4, c)
    # and rows are per-image pooled rows r stacked over the batch block.
    wl_np = np.asarray(raw["wl"], np.float32).reshape(4, C2, H4, W4)
    wl_rkn = np.transpose(wl_np, (2, 3, 1, 0)).reshape(H4, W4 * C2, 4)   # [r,k,n]
    wl_cat = np.transpose(wl_rkn, (1, 2, 0)).reshape(W4 * C2, 4 * H4)    # [k,n*H4+r]
    mdiag = (np.arange(b_blk * H4)[:, None] % H4 ==
             np.arange(4 * H4)[None, :] % H4).astype(np.float32)
    gsum = np.zeros((4 * H4, 4), np.float32)
    for n in range(4):
        gsum[n * H4:(n + 1) * H4, n] = 1.0
    rowsum = np.zeros((b_blk, b_blk * H4), np.float32)
    for b in range(b_blk):
        rowsum[b, b * H4:(b + 1) * H4] = 1.0

    bf16 = jnp.bfloat16
    params = dict(
        m1=jnp.asarray(m1, bf16),
        s1=jnp.asarray(np.tile(shift1, w_in).reshape(1, -1), jnp.float32),
        sel1=jnp.asarray(sel1, bf16),
        m2=jnp.asarray(m2, bf16),
        s2=jnp.asarray(np.tile(shift2, W2).reshape(1, -1), jnp.float32),
        sel2=jnp.asarray(sel2, bf16),
        wl_cat=jnp.asarray(wl_cat, bf16),
        mdiag=jnp.asarray(mdiag, jnp.float32),
        gsum=jnp.asarray(gsum, jnp.float32),
        rowsum=jnp.asarray(rowsum, jnp.float32),
        bl=jnp.asarray(np.asarray(raw["bl"]).reshape(1, 4), jnp.float32),
    )
    return params, raw


# -----------------------------------------------------------------------------
# Forward pass: one fused pallas_call, B_blk images per grid step
# -----------------------------------------------------------------------------
@functools.partial(jax.jit, static_argnames=("b_blk",))
def model_forward(x_nchw, params, *, b_blk=4):
    B, C, H, W = x_nchw.shape
    assert C == C0 and H % 4 == 0 and W % 4 == 0
    H2, W2, H4, W4 = H // 2, W // 2, H // 4, W // 4
    n_steps = pl.cdiv(B, b_blk)
    Bp = n_steps * b_blk

    # NCHW -> channels-last rows, bf16; zero height-padding + batch-block row
    # stacking are done once here (outside the hot loop), not per grid step.
    x = jnp.transpose(x_nchw, (0, 2, 3, 1)).reshape(B, H, W * C0)
    x = x.astype(jnp.bfloat16)
    if Bp != B:
        x = jnp.pad(x, ((0, Bp - B), (0, 0), (0, 0)))
    xpad = jnp.pad(x, ((0, 0), (1, 1), (0, 0))).reshape(Bp * (H + 2), W * C0)

    n_rows1 = b_blk * (H + 2) - 2
    n_rows2 = b_blk * (H2 + 2) - 2
    kernel = functools.partial(_fused_model_kernel,
                               n_rows1=n_rows1, n_rows2=n_rows2,
                               half1=W2 * C1, half2=W4 * C2)

    out = pl.pallas_call(
        kernel,
        out_shape=jax.ShapeDtypeStruct((n_steps, b_blk, 4), jnp.float32),
        grid=(n_steps,),
        in_specs=[
            pl.BlockSpec((b_blk * (H + 2), W * C0), lambda g: (g, 0)),
            pl.BlockSpec((3, W * C0, W * C1), lambda g: (0, 0, 0)),
            pl.BlockSpec((1, W * C1), lambda g: (0, 0)),
            pl.BlockSpec(params["sel1"].shape, lambda g: (0, 0, 0)),
            pl.BlockSpec((3, W2 * C1, W2 * C2), lambda g: (0, 0, 0)),
            pl.BlockSpec((1, W2 * C2), lambda g: (0, 0)),
            pl.BlockSpec(params["sel2"].shape, lambda g: (0, 0, 0)),
            pl.BlockSpec(params["wl_cat"].shape, lambda g: (0, 0)),
            pl.BlockSpec(params["mdiag"].shape, lambda g: (0, 0)),
            pl.BlockSpec(params["gsum"].shape, lambda g: (0, 0)),
            pl.BlockSpec(params["rowsum"].shape, lambda g: (0, 0)),
            pl.BlockSpec((1, 4), lambda g: (0, 0)),
        ],
        out_specs=pl.BlockSpec((None, b_blk, 4), lambda g: (g, 0, 0)),
        compiler_params=pltpu.CompilerParams(
            dimension_semantics=("parallel",)),
    )(xpad, params["m1"], params["s1"], params["sel1"],
      params["m2"], params["s2"], params["sel2"],
      params["wl_cat"], params["mdiag"], params["gsum"], params["rowsum"],
      params["bl"])
    return out.reshape(Bp, 4)[:B]


# -----------------------------------------------------------------------------
# Pure-JAX reference (matches the PyTorch module in eval mode)
# -----------------------------------------------------------------------------
def reference_forward(x_nchw, raw):
    eps = 1e-5
    x = jnp.transpose(x_nchw, (0, 2, 3, 1)).astype(jnp.float32)   # NHWC

    def block(x, w_oihw, b, gamma, beta):
        w_hwio = jnp.transpose(w_oihw, (2, 3, 1, 0))
        y = jax.lax.conv_general_dilated(
            x, w_hwio, window_strides=(1, 1), padding="SAME",
            dimension_numbers=("NHWC", "HWIO", "NHWC"),
            precision=jax.lax.Precision.HIGHEST)
        y = y + b
        y = y * (gamma / jnp.sqrt(1.0 + eps)) + beta
        y = jnp.maximum(y, 0.0)
        return jax.lax.reduce_window(y, -jnp.inf, jax.lax.max,
                                     (1, 2, 2, 1), (1, 2, 2, 1), "VALID")

    y = block(x, raw["w1"], raw["b1"], raw["g1"], raw["beta1"])
    y = block(y, raw["w2"], raw["b2"], raw["g2"], raw["beta2"])
    y = jnp.transpose(y, (0, 3, 1, 2)).reshape(x.shape[0], -1)    # NCHW flatten
    return jnp.dot(y, raw["wl"].T,
                   precision=jax.lax.Precision.HIGHEST) + raw["bl"]


if __name__ == "__main__":
    # TODO(synk): the original module's flatten size (32*256*256) implies
    # 1024x1024 inputs; we run the same architecture at a small 16x16 spatial
    # size (flatten 512). Scaling up needs a width-tiled banded conv layout
    # (the (W*Cin, W*Cout) matrices grow O(W^2)).
    B, H, W = 8, 16, 16
    B_BLK = 4                      # images per grid step; grid=(2,) -> 2 TCs on v7x
    key = jax.random.PRNGKey(0)
    k_x, k_p = jax.random.split(key)
    x = jax.random.normal(k_x, (B, C0, H, W), jnp.float32)
    params, raw = make_params(k_p, H, W, B_BLK)

    out = jax.block_until_ready(model_forward(x, params, b_blk=B_BLK))
    assert out.shape == (B, 4), out.shape
    assert bool(jnp.all(jnp.isfinite(out)))

    ref = np.asarray(reference_forward(x, raw))
    assert np.allclose(np.asarray(out), ref, atol=3e-2, rtol=3e-2), (
        float(np.abs(np.asarray(out) - ref).max()))
    print("KERNEL_OK")
</pallas_src>

<mosaic_0001>
module attributes {stable_mosaic.version = 11 : i64} {
  func.func @_fused_model_kernel(%arg0: i32, %arg1: memref<72x48xbf16, #tpu.memory_space<vmem>>, %arg2: memref<3x48x256xbf16, #tpu.memory_space<vmem>>, %arg3: memref<1x256xf32, #tpu.memory_space<vmem>>, %arg4: memref<2x40x70xbf16, #tpu.memory_space<vmem>>, %arg5: memref<3x128x256xbf16, #tpu.memory_space<vmem>>, %arg6: memref<1x256xf32, #tpu.memory_space<vmem>>, %arg7: memref<2x16x38xbf16, #tpu.memory_space<vmem>>, %arg8: memref<128x16xbf16, #tpu.memory_space<vmem>>, %arg9: memref<16x16xf32, #tpu.memory_space<vmem>>, %arg10: memref<16x4xf32, #tpu.memory_space<vmem>>, %arg11: memref<4x16xf32, #tpu.memory_space<vmem>>, %arg12: memref<1x4xf32, #tpu.memory_space<vmem>>, %arg13: memref<1x4x4xf32, #tpu.memory_space<vmem>>) attributes {dimension_semantics = [#tpu.dimension_semantics<parallel>], iteration_bounds = array<i64: 2>, scalar_prefetch = 0 : i64, scratch_operands = 0 : i64, tpu.core_type = #tpu.core_type<tc>, window_params = [{transform_indices = @transform_0, window_bounds = array<i64: 72, 48>}, {pipeline_mode = #tpu.pipeline_mode<synchronous>, transform_indices = @transform_1, window_bounds = array<i64: 3, 48, 256>}, {pipeline_mode = #tpu.pipeline_mode<synchronous>, transform_indices = @transform_2, window_bounds = array<i64: 1, 256>}, {pipeline_mode = #tpu.pipeline_mode<synchronous>, transform_indices = @transform_3, window_bounds = array<i64: 2, 40, 70>}, {pipeline_mode = #tpu.pipeline_mode<synchronous>, transform_indices = @transform_4, window_bounds = array<i64: 3, 128, 256>}, {pipeline_mode = #tpu.pipeline_mode<synchronous>, transform_indices = @transform_5, window_bounds = array<i64: 1, 256>}, {pipeline_mode = #tpu.pipeline_mode<synchronous>, transform_indices = @transform_6, window_bounds = array<i64: 2, 16, 38>}, {pipeline_mode = #tpu.pipeline_mode<synchronous>, transform_indices = @transform_7, window_bounds = array<i64: 128, 16>}, {pipeline_mode = #tpu.pipeline_mode<synchronous>, transform_indices = @transform_8, window_bounds = array<i64: 16, 16>}, {pipeline_mode = #tpu.pipeline_mode<synchronous>, transform_indices = @transform_9, window_bounds = array<i64: 16, 4>}, {pipeline_mode = #tpu.pipeline_mode<synchronous>, transform_indices = @transform_10, window_bounds = array<i64: 4, 16>}, {pipeline_mode = #tpu.pipeline_mode<synchronous>, transform_indices = @transform_11, window_bounds = array<i64: 1, 4>}, {transform_indices = @transform_12, window_bounds = array<i64: 1, 4, 4>}]} {
    %c0 = arith.constant 0 : index
    %c0_0 = arith.constant 0 : index
    %0 = vector.load %arg1[%c0, %c0_0] : memref<72x48xbf16, #tpu.memory_space<vmem>>, vector<72x48xbf16>
    %c0_1 = arith.constant 0 : index
    %c0_2 = arith.constant 0 : index
    %1 = vector.load %arg3[%c0_1, %c0_2] : memref<1x256xf32, #tpu.memory_space<vmem>>, vector<1x256xf32>
    %2 = vector.extract_strided_slice %0 {offsets = [0, 0], sizes = [70, 48], strides = [1, 1]} : vector<72x48xbf16> to vector<70x48xbf16>
    %c0_3 = arith.constant 0 : index
    %c0_4 = arith.constant 0 : index
    %c0_5 = arith.constant 0 : index
    %3 = vector.load %arg2[%c0_3, %c0_4, %c0_5] : memref<3x48x256xbf16, #tpu.memory_space<vmem>>, vector<1x48x256xbf16>
    %4 = vector.shape_cast %3 : vector<1x48x256xbf16> to vector<48x256xbf16>
    %cst = arith.constant dense<0.000000e+00> : vector<70x256xf32>
    %5 = tpu.matmul %2, %4, %cst {dimension_numbers = #tpu.dot_dimension_numbers<[1], [0], [0], [1], [0, 0, 1, 1], [], []>} : vector<70x48xbf16>, vector<48x256xbf16>, vector<70x256xf32> -> vector<70x256xf32>
    %6 = vector.extract_strided_slice %0 {offsets = [1, 0], sizes = [70, 48], strides = [1, 1]} : vector<72x48xbf16> to vector<70x48xbf16>
    %c1 = arith.constant 1 : index
    %c0_6 = arith.constant 0 : index
    %c0_7 = arith.constant 0 : index
    %7 = vector.load %arg2[%c1, %c0_6, %c0_7] : memref<3x48x256xbf16, #tpu.memory_space<vmem>>, vector<1x48x256xbf16>
    %8 = vector.shape_cast %7 : vector<1x48x256xbf16> to vector<48x256xbf16>
    %cst_8 = arith.constant dense<0.000000e+00> : vector<70x256xf32>
    %9 = tpu.matmul %6, %8, %cst_8 {dimension_numbers = #tpu.dot_dimension_numbers<[1], [0], [0], [1], [0, 0, 1, 1], [], []>} : vector<70x48xbf16>, vector<48x256xbf16>, vector<70x256xf32> -> vector<70x256xf32>
    %10 = arith.addf %5, %9 : vector<70x256xf32>
    %11 = vector.extract_strided_slice %0 {offsets = [2, 0], sizes = [70, 48], strides = [1, 1]} : vector<72x48xbf16> to vector<70x48xbf16>
    %c2 = arith.constant 2 : index
    %c0_9 = arith.constant 0 : index
    %c0_10 = arith.constant 0 : index
    %12 = vector.load %arg2[%c2, %c0_9, %c0_10] : memref<3x48x256xbf16, #tpu.memory_space<vmem>>, vector<1x48x256xbf16>
    %13 = vector.shape_cast %12 : vector<1x48x256xbf16> to vector<48x256xbf16>
    %cst_11 = arith.constant dense<0.000000e+00> : vector<70x256xf32>
    %14 = tpu.matmul %11, %13, %cst_11 {dimension_numbers = #tpu.dot_dimension_numbers<[1], [0], [0], [1], [0, 0, 1, 1], [], []>} : vector<70x48xbf16>, vector<48x256xbf16>, vector<70x256xf32> -> vector<70x256xf32>
    %15 = arith.addf %10, %14 : vector<70x256xf32>
    %16 = vector.broadcast %1 : vector<1x256xf32> to vector<70x256xf32>
    %17 = arith.addf %15, %16 : vector<70x256xf32>
    %cst_12 = arith.constant 0.000000e+00 : f32
    %18 = vector.broadcast %cst_12 : f32 to vector<70x256xf32>
    %19 = arith.maximumf %17, %18 : vector<70x256xf32>
    %20 = vector.extract_strided_slice %19 {offsets = [0, 0], sizes = [70, 128], strides = [1, 1]} : vector<70x256xf32> to vector<70x128xf32>
    %21 = vector.extract_strided_slice %19 {offsets = [0, 128], sizes = [70, 128], strides = [1, 1]} : vector<70x256xf32> to vector<70x128xf32>
    %22 = arith.maximumf %20, %21 : vector<70x128xf32>
    %23 = arith.truncf %22 : vector<70x128xf32> to vector<70x128xbf16>
    %c0_13 = arith.constant 0 : index
    %c0_14 = arith.constant 0 : index
    %c0_15 = arith.constant 0 : index
    %24 = vector.load %arg4[%c0_13, %c0_14, %c0_15] : memref<2x40x70xbf16, #tpu.memory_space<vmem>>, vector<1x40x70xbf16>
    %25 = vector.shape_cast %24 : vector<1x40x70xbf16> to vector<40x70xbf16>
    %cst_16 = arith.constant dense<0.000000e+00> : vector<40x128xf32>
    %26 = tpu.matmul %25, %23, %cst_16 {dimension_numbers = #tpu.dot_dimension_numbers<[1], [0], [0], [1], [0, 0, 1, 1], [], []>} : vector<40x70xbf16>, vector<70x128xbf16>, vector<40x128xf32> -> vector<40x128xf32>
    %c1_17 = arith.constant 1 : index
    %c0_18 = arith.constant 0 : index
    %c0_19 = arith.constant 0 : index
    %27 = vector.load %arg4[%c1_17, %c0_18, %c0_19] : memref<2x40x70xbf16, #tpu.memory_space<vmem>>, vector<1x40x70xbf16>
    %28 = vector.shape_cast %27 : vector<1x40x70xbf16> to vector<40x70xbf16>
    %cst_20 = arith.constant dense<0.000000e+00> : vector<40x128xf32>
    %29 = tpu.matmul %28, %23, %cst_20 {dimension_numbers = #tpu.dot_dimension_numbers<[1], [0], [0], [1], [0, 0, 1, 1], [], []>} : vector<40x70xbf16>, vector<70x128xbf16>, vector<40x128xf32> -> vector<40x128xf32>
    %30 = arith.maximumf %26, %29 : vector<40x128xf32>
    %31 = arith.truncf %30 : vector<40x128xf32> to vector<40x128xbf16>
    %c0_21 = arith.constant 0 : index
    %c0_22 = arith.constant 0 : index
    %32 = vector.load %arg6[%c0_21, %c0_22] : memref<1x256xf32, #tpu.memory_space<vmem>>, vector<1x256xf32>
    %33 = vector.extract_strided_slice %31 {offsets = [0, 0], sizes = [38, 128], strides = [1, 1]} : vector<40x128xbf16> to vector<38x128xbf16>
    %c0_23 = arith.constant 0 : index
    %c0_24 = arith.constant 0 : index
    %c0_25 = arith.constant 0 : index
    %34 = vector.load %arg5[%c0_23, %c0_24, %c0_25] : memref<3x128x256xbf16, #tpu.memory_space<vmem>>, vector<1x128x256xbf16>
    %35 = vector.shape_cast %34 : vector<1x128x256xbf16> to vector<128x256xbf16>
    %cst_26 = arith.constant dense<0.000000e+00> : vector<38x256xf32>
    %36 = tpu.matmul %33, %35, %cst_26 {dimension_numbers = #tpu.dot_dimension_numbers<[1], [0], [0], [1], [0, 0, 1, 1], [], []>} : vector<38x128xbf16>, vector<128x256xbf16>, vector<38x256xf32> -> vector<38x256xf32>
    %37 = vector.extract_strided_slice %31 {offsets = [1, 0], sizes = [38, 128], strides = [1, 1]} : vector<40x128xbf16> to vector<38x128xbf16>
    %c1_27 = arith.constant 1 : index
    %c0_28 = arith.constant 0 : index
    %c0_29 = arith.constant 0 : index
    %38 = vector.load %arg5[%c1_27, %c0_28, %c0_29] : memref<3x128x256xbf16, #tpu.memory_space<vmem>>, vector<1x128x256xbf16>
    %39 = vector.shape_cast %38 : vector<1x128x256xbf16> to vector<128x256xbf16>
    %cst_30 = arith.constant dense<0.000000e+00> : vector<38x256xf32>
    %40 = tpu.matmul %37, %39, %cst_30 {dimension_numbers = #tpu.dot_dimension_numbers<[1], [0], [0], [1], [0, 0, 1, 1], [], []>} : vector<38x128xbf16>, vector<128x256xbf16>, vector<38x256xf32> -> vector<38x256xf32>
    %41 = arith.addf %36, %40 : vector<38x256xf32>
    %42 = vector.extract_strided_slice %31 {offsets = [2, 0], sizes = [38, 128], strides = [1, 1]} : vector<40x128xbf16> to vector<38x128xbf16>
    %c2_31 = arith.constant 2 : index
    %c0_32 = arith.constant 0 : index
    %c0_33 = arith.constant 0 : index
    %43 = vector.load %arg5[%c2_31, %c0_32, %c0_33] : memref<3x128x256xbf16, #tpu.memory_space<vmem>>, vector<1x128x256xbf16>
    %44 = vector.shape_cast %43 : vector<1x128x256xbf16> to vector<128x256xbf16>
    %cst_34 = arith.constant dense<0.000000e+00> : vector<38x256xf32>
    %45 = tpu.matmul %42, %44, %cst_34 {dimension_numbers = #tpu.dot_dimension_numbers<[1], [0], [0], [1], [0, 0, 1, 1], [], []>} : vector<38x128xbf16>, vector<128x256xbf16>, vector<38x256xf32> -> vector<38x256xf32>
    %46 = arith.addf %41, %45 : vector<38x256xf32>
    %47 = vector.broadcast %32 : vector<1x256xf32> to vector<38x256xf32>
    %48 = arith.addf %46, %47 : vector<38x256xf32>
    %cst_35 = arith.constant 0.000000e+00 : f32
    %49 = vector.broadcast %cst_35 : f32 to vector<38x256xf32>
    %50 = arith.maximumf %48, %49 : vector<38x256xf32>
    %51 = vector.extract_strided_slice %50 {offsets = [0, 0], sizes = [38, 128], strides = [1, 1]} : vector<38x256xf32> to vector<38x128xf32>
    %52 = vector.extract_strided_slice %50 {offsets = [0, 128], sizes = [38, 128], strides = [1, 1]} : vector<38x256xf32> to vector<38x128xf32>
    %53 = arith.maximumf %51, %52 : vector<38x128xf32>
    %54 = arith.truncf %53 : vector<38x128xf32> to vector<38x128xbf16>
    %c0_36 = arith.constant 0 : index
    %c0_37 = arith.constant 0 : index
    %c0_38 = arith.constant 0 : index
    %55 = vector.load %arg7[%c0_36, %c0_37, %c0_38] : memref<2x16x38xbf16, #tpu.memory_space<vmem>>, vector<1x16x38xbf16>
    %56 = vector.shape_cast %55 : vector<1x16x38xbf16> to vector<16x38xbf16>
    %cst_39 = arith.constant dense<0.000000e+00> : vector<16x128xf32>
    %57 = tpu.matmul %56, %54, %cst_39 {dimension_numbers = #tpu.dot_dimension_numbers<[1], [0], [0], [1], [0, 0, 1, 1], [], []>} : vector<16x38xbf16>, vector<38x128xbf16>, vector<16x128xf32> -> vector<16x128xf32>
    %c1_40 = arith.constant 1 : index
    %c0_41 = arith.constant 0 : index
    %c0_42 = arith.constant 0 : index
    %58 = vector.load %arg7[%c1_40, %c0_41, %c0_42] : memref<2x16x38xbf16, #tpu.memory_space<vmem>>, vector<1x16x38xbf16>
    %59 = vector.shape_cast %58 : vector<1x16x38xbf16> to vector<16x38xbf16>
    %cst_43 = arith.constant dense<0.000000e+00> : vector<16x128xf32>
    %60 = tpu.matmul %59, %54, %cst_43 {dimension_numbers = #tpu.dot_dimension_numbers<[1], [0], [0], [1], [0, 0, 1, 1], [], []>} : vector<16x38xbf16>, vector<38x128xbf16>, vector<16x128xf32> -> vector<16x128xf32>
    %61 = arith.maximumf %57, %60 : vector<16x128xf32>
    %62 = arith.truncf %61 : vector<16x128xf32> to vector<16x128xbf16>
    %c0_44 = arith.constant 0 : index
    %c0_45 = arith.constant 0 : index
    %63 = vector.load %arg8[%c0_44, %c0_45] : memref<128x16xbf16, #tpu.memory_space<vmem>>, vector<128x16xbf16>
    %cst_46 = arith.constant dense<0.000000e+00> : vector<16x16xf32>
    %64 = tpu.matmul %62, %63, %cst_46 {dimension_numbers = #tpu.dot_dimension_numbers<[1], [0], [0], [1], [0, 0, 1, 1], [], []>} : vector<16x128xbf16>, vector<128x16xbf16>, vector<16x16xf32> -> vector<16x16xf32>
    %c0_47 = arith.constant 0 : index
    %c0_48 = arith.constant 0 : index
    %65 = vector.load %arg9[%c0_47, %c0_48] : memref<16x16xf32, #tpu.memory_space<vmem>>, vector<16x16xf32>
    %66 = arith.mulf %64, %65 : vector<16x16xf32>
    %c0_49 = arith.constant 0 : index
    %c0_50 = arith.constant 0 : index
    %67 = vector.load %arg10[%c0_49, %c0_50] : memref<16x4xf32, #tpu.memory_space<vmem>>, vector<16x4xf32>
    %cst_51 = arith.constant dense<0.000000e+00> : vector<16x4xf32>
    %68 = tpu.matmul %66, %67, %cst_51 {dimension_numbers = #tpu.dot_dimension_numbers<[1], [0], [0], [1], [0, 0, 1, 1], [], []>} : vector<16x16xf32>, vector<16x4xf32>, vector<16x4xf32> -> vector<16x4xf32>
    %c0_52 = arith.constant 0 : index
    %c0_53 = arith.constant 0 : index
    %69 = vector.load %arg11[%c0_52, %c0_53] : memref<4x16xf32, #tpu.memory_space<vmem>>, vector<4x16xf32>
    %cst_54 = arith.constant dense<0.000000e+00> : vector<4x4xf32>
    %70 = tpu.matmul %69, %68, %cst_54 {dimension_numbers = #tpu.dot_dimension_numbers<[1], [0], [0], [1], [0, 0, 1, 1], [], []>} : vector<4x16xf32>, vector<16x4xf32>, vector<4x4xf32> -> vector<4x4xf32>
    %c0_55 = arith.constant 0 : index
    %c0_56 = arith.constant 0 : index
    %71 = vector.load %arg12[%c0_55, %c0_56] : memref<1x4xf32, #tpu.memory_space<vmem>>, vector<1x4xf32>
    %72 = vector.broadcast %71 : vector<1x4xf32> to vector<4x4xf32>
    %73 = arith.addf %70, %72 : vector<4x4xf32>
    %c0_57 = arith.constant 0 : index
    %c0_58 = arith.constant 0 : index
    %c0_59 = arith.constant 0 : index
    %74 = vector.load %arg13[%c0_57, %c0_58, %c0_59] : memref<1x4x4xf32, #tpu.memory_space<vmem>>, vector<1x4x4xf32>
    %75 = vector.shape_cast %74 : vector<1x4x4xf32> to vector<4x4xf32>
    %76 = vector.shape_cast %73 : vector<4x4xf32> to vector<1x4x4xf32>
    tpu.vector_store %arg13[%c0_57, %c0_58, %c0_59], %76 {strides = array<i32>} : memref<1x4x4xf32, #tpu.memory_space<vmem>>, vector<1x4x4xf32>,
    return
  }
  func.func @transform_0(%arg0: i32) -> (i32, i32) {
    %c0_i32 = arith.constant 0 : i32
    %c0_i32_0 = arith.constant 0 : i32
    return %arg0, %c0_i32 : i32, i32
  }
  func.func @transform_1(%arg0: i32) -> (i32, i32, i32) {
    %c0_i32 = arith.constant 0 : i32
    %c0_i32_0 = arith.constant 0 : i32
    %c0_i32_1 = arith.constant 0 : i32
    %c0_i32_2 = arith.constant 0 : i32
    return %c0_i32, %c0_i32_0, %c0_i32_1 : i32, i32, i32
  }
  func.func @transform_2(%arg0: i32) -> (i32, i32) {
    %c0_i32 = arith.constant 0 : i32
    %c0_i32_0 = arith.constant 0 : i32
    %c0_i32_1 = arith.constant 0 : i32
    return %c0_i32, %c0_i32_0 : i32, i32
  }
  func.func @transform_3(%arg0: i32) -> (i32, i32, i32) {
    %c0_i32 = arith.constant 0 : i32
    %c0_i32_0 = arith.constant 0 : i32
    %c0_i32_1 = arith.constant 0 : i32
    %c0_i32_2 = arith.constant 0 : i32
    return %c0_i32, %c0_i32_0, %c0_i32_1 : i32, i32, i32
  }
  func.func @transform_4(%arg0: i32) -> (i32, i32, i32) {
    %c0_i32 = arith.constant 0 : i32
    %c0_i32_0 = arith.constant 0 : i32
    %c0_i32_1 = arith.constant 0 : i32
    %c0_i32_2 = arith.constant 0 : i32
    return %c0_i32, %c0_i32_0, %c0_i32_1 : i32, i32, i32
  }
  func.func @transform_5(%arg0: i32) -> (i32, i32) {
    %c0_i32 = arith.constant 0 : i32
    %c0_i32_0 = arith.constant 0 : i32
    %c0_i32_1 = arith.constant 0 : i32
    return %c0_i32, %c0_i32_0 : i32, i32
  }
  func.func @transform_6(%arg0: i32) -> (i32, i32, i32) {
    %c0_i32 = arith.constant 0 : i32
    %c0_i32_0 = arith.constant 0 : i32
    %c0_i32_1 = arith.constant 0 : i32
    %c0_i32_2 = arith.constant 0 : i32
    return %c0_i32, %c0_i32_0, %c0_i32_1 : i32, i32, i32
  }
  func.func @transform_7(%arg0: i32) -> (i32, i32) {
    %c0_i32 = arith.constant 0 : i32
    %c0_i32_0 = arith.constant 0 : i32
    %c0_i32_1 = arith.constant 0 : i32
    return %c0_i32, %c0_i32_0 : i32, i32
  }
  func.func @transform_8(%arg0: i32) -> (i32, i32) {
    %c0_i32 = arith.constant 0 : i32
    %c0_i32_0 = arith.constant 0 : i32
    %c0_i32_1 = arith.constant 0 : i32
    return %c0_i32, %c0_i32_0 : i32, i32
  }
  func.func @transform_9(%arg0: i32) -> (i32, i32) {
    %c0_i32 = arith.constant 0 : i32
    %c0_i32_0 = arith.constant 0 : i32
    %c0_i32_1 = arith.constant 0 : i32
    return %c0_i32, %c0_i32_0 : i32, i32
  }
  func.func @transform_10(%arg0: i32) -> (i32, i32) {
    %c0_i32 = arith.constant 0 : i32
    %c0_i32_0 = arith.constant 0 : i32
    %c0_i32_1 = arith.constant 0 : i32
    return %c0_i32, %c0_i32_0 : i32, i32
  }
  func.func @transform_11(%arg0: i32) -> (i32, i32) {
    %c0_i32 = arith.constant 0 : i32
    %c0_i32_0 = arith.constant 0 : i32
    %c0_i32_1 = arith.constant 0 : i32
    return %c0_i32, %c0_i32_0 : i32, i32
  }
  func.func @transform_12(%arg0: i32) -> (i32, i32, i32) {
    %c0_i32 = arith.constant 0 : i32
    %c0_i32_0 = arith.constant 0 : i32
    %c0_i32_1 = arith.constant 0 : i32
    return %arg0, %c0_i32, %c0_i32_0 : i32, i32, i32
  }
}

</mosaic_0001>

<llo_original>
// kernel: model_forward.1
$region0: #{model_forward.1}
  #allocation0 [shape = 'u32[]', space=smem, size = 0x4, offset = 0x4, fixed_abs, tag = 'smem constant byte address 0x4 - core index']
  #allocation1 [shape = 'u32[72,128]{1,0:T(1,128)}', space=vmem, size = 0x9000, scoped, tag = 'internal scratch']
  %s0 = inlined_call_operand.vmem [shape: bf16[144,48], index: 0, kind: input, shape index: {}]
  %s1 = inlined_call_operand.vmem [shape: bf16[3,48,256], index: 1, kind: input, shape index: {}]
  %s2 = inlined_call_operand.vmem [shape: f32[1,256], index: 2, kind: input, shape index: {}]
  %s3 = inlined_call_operand.vmem [shape: bf16[2,40,70], index: 3, kind: input, shape index: {}]
  %s4 = inlined_call_operand.vmem [shape: bf16[3,128,256], index: 4, kind: input, shape index: {}]
  %s5 = inlined_call_operand.vmem [shape: f32[1,256], index: 5, kind: input, shape index: {}]
  %s6 = inlined_call_operand.vmem [shape: bf16[2,16,38], index: 6, kind: input, shape index: {}]
  %s7 = inlined_call_operand.vmem [shape: bf16[128,16], index: 7, kind: input, shape index: {}]
  %s8 = inlined_call_operand.vmem [shape: f32[16,16], index: 8, kind: input, shape index: {}]
  %s9 = inlined_call_operand.vmem [shape: f32[16,4], index: 9, kind: input, shape index: {}]
  %s10 = inlined_call_operand.vmem [shape: f32[4,16], index: 10, kind: input, shape index: {}]
  %s11 = inlined_call_operand.vmem [shape: f32[1,4], index: 11, kind: input, shape index: {}]
  %s12 = inlined_call_operand.vmem [shape: f32[2,4,4], index: 12, kind: output, shape index: {}]
  %s13 = sld [smem:[#allocation0]]
  $region81: #{model_forward.1} parent=0
    _
  %s15 = ssub.s32 1, %s13
  %s16 = scalar_select 0, %s15, %s13
  loop: start=0, step=1, limit=4
  $region2: #{model_forward.1} parent=0 // loop_pre_header
    _
  $region3: #{model_forward.1} parent=0 // loop_header
    %s18 = sphi 0, %s22
    %p19 = scmp.ge.s32.totalorder %s18, 4
    %s28 = sphi 0, %s30
    %s31 = sphi 0, %s28
    %s32 = sphi 0, %s31
    %s48 = sphi 0, %s32
    %s52 = sphi 0, %s52
    %s54 = sphi 0, %s52
    %s55 = sphi 0, %s54
    %s69 = sphi 0, %s55
    %s73 = sphi 0, %s73
    %s75 = sphi 0, %s73
    %s76 = sphi 0, %s75
    %s90 = sphi 0, %s76
    %s94 = sphi 0, %s94
    %s96 = sphi 0, %s94
    %s97 = sphi 0, %s96
    %s111 = sphi 0, %s97
    %s115 = sphi 0, %s115
    %s117 = sphi 0, %s115
    %s118 = sphi 0, %s117
    %s132 = sphi 0, %s118
    %s136 = sphi 0, %s136
    %s138 = sphi 0, %s136
    %s139 = sphi 0, %s138
    %s153 = sphi 0, %s139
    %s157 = sphi 0, %s157
    %s159 = sphi 0, %s157
    %s160 = sphi 0, %s159
    %s174 = sphi 0, %s160
    %s178 = sphi 0, %s178
    %s180 = sphi 0, %s178
    %s181 = sphi 0, %s180
    %s195 = sphi 0, %s181
    %s199 = sphi 0, %s199
    %s201 = sphi 0, %s199
    %s202 = sphi 0, %s201
    %s216 = sphi 0, %s202
    %s220 = sphi 0, %s220
    %s222 = sphi 0, %s220
    %s223 = sphi 0, %s222
    %s237 = sphi 0, %s223
    %s241 = sphi 0, %s241
    %s243 = sphi 0, %s241
    %s244 = sphi 0, %s243
    %s258 = sphi 0, %s244
    %s262 = sphi 0, %s262
    %s264 = sphi 0, %s262
    %s265 = sphi 0, %s264
    %s279 = sphi 0, %s265
    %s285 = sphi 0, %s287
    %s288 = sphi 0, %s285
    %s289 = sphi 0, %s288
    %s305 = sphi 0, %s289
  $region4: #{model_forward.1} parent=0 // loop_header_branch
    %21 = sbr.rel (%p19) target = $region8
  $region5: #{model_forward.1} parent=0 // loop_body
    %s23 = ssub.s32 %s18, 1
    %s24 = ssub.s32 %s18, 2
    %s25 = sadd.s32 %s18, 1
    %s26 = ssub.s32 %s18, %s25
    %p27 = scmp.eq.s32.totalorder %s26, 0
    %s29 = sadd.s32 %s28, 1
    %s30 = scalar_select %p27, %s28, %s29
    %p33 = pneg %p27
    %p34 = scmp.eq.s32.totalorder %s18, 1
    %p35 = por %p33, %p34
    %p36 = scmp.ne.s32.totalorder %s28, %s31
    %p37 = scmp.eq.s32.totalorder %s18, 0
    %p38 = por %p36, %p37
    %p39 = scmp.ne.s32.totalorder %s28, %s31
    %p40 = scmp.eq.s32.totalorder %s23, 1
    %p41 = por %p39, %p40
    %p42 = scmp.ne.s32.totalorder %s31, %s32
    %p43 = scmp.eq.s32.totalorder %s23, 0
    %p44 = por %p42, %p43
    %p45 = scmp.ne.s32.totalorder %s31, %s32
    %p46 = scmp.eq.s32.totalorder %s24, 1
    %p47 = por %p45, %p46
    %p49 = scmp.ne.s32.totalorder %s32, %s48
    %p50 = scmp.eq.s32.totalorder %s24, 0
    %p51 = por %p49, %p50
    %s53 = sadd.s32 %s52, 1
    %p56 = scmp.eq.s32.totalorder %s18, 1
    %p57 = scmp.ne.s32.totalorder %s52, %s54
    %p58 = scmp.eq.s32.totalorder %s18, 0
    %p59 = por %p57, %p58
    %p60 = scmp.ne.s32.totalorder %s52, %s54
    %p61 = scmp.eq.s32.totalorder %s23, 1
    %p62 = por %p60, %p61
    %p63 = scmp.ne.s32.totalorder %s54, %s55
    %p64 = scmp.eq.s32.totalorder %s23, 0
    %p65 = por %p63, %p64
    %p66 = scmp.ne.s32.totalorder %s54, %s55
    %p67 = scmp.eq.s32.totalorder %s24, 1
    %p68 = por %p66, %p67
    %p70 = scmp.ne.s32.totalorder %s55, %s69
    %p71 = scmp.eq.s32.totalorder %s24, 0
    %p72 = por %p70, %p71
    %s74 = sadd.s32 %s73, 1
    %p77 = scmp.eq.s32.totalorder %s18, 1
    %p78 = scmp.ne.s32.totalorder %s73, %s75
    %p79 = scmp.eq.s32.totalorder %s18, 0
    %p80 = por %p78, %p79
    %p81 = scmp.ne.s32.totalorder %s73, %s75
    %p82 = scmp.eq.s32.totalorder %s23, 1
    %p83 = por %p81, %p82
    %p84 = scmp.ne.s32.totalorder %s75, %s76
    %p85 = scmp.eq.s32.totalorder %s23, 0
    %p86 = por %p84, %p85
    %p87 = scmp.ne.s32.totalorder %s75, %s76
    %p88 = scmp.eq.s32.totalorder %s24, 1
    %p89 = por %p87, %p88
    %p91 = scmp.ne.s32.totalorder %s76, %s90
    %p92 = scmp.eq.s32.totalorder %s24, 0
    %p93 = por %p91, %p92
    %s95 = sadd.s32 %s94, 1
    %p98 = scmp.eq.s32.totalorder %s18, 1
    %p99 = scmp.ne.s32.totalorder %s94, %s96
    %p100 = scmp.eq.s32.totalorder %s18, 0
    %p101 = por %p99, %p100
    %p102 = scmp.ne.s32.totalorder %s94, %s96
    %p103 = scmp.eq.s32.totalorder %s23, 1
    %p104 = por %p102, %p103
    %p105 = scmp.ne.s32.totalorder %s96, %s97
    %p106 = scmp.eq.s32.totalorder %s23, 0
    %p107 = por %p105, %p106
    %p108 = scmp.ne.s32.totalorder %s96, %s97
    %p109 = scmp.eq.s32.totalorder %s24, 1
    %p110 = por %p108, %p109
    %p112 = scmp.ne.s32.totalorder %s97, %s111
    %p113 = scmp.eq.s32.totalorder %s24, 0
    %p114 = por %p112, %p113
    %s116 = sadd.s32 %s115, 1
    %p119 = scmp.eq.s32.totalorder %s18, 1
    %p120 = scmp.ne.s32.totalorder %s115, %s117
    %p121 = scmp.eq.s32.totalorder %s18, 0
    %p122 = por %p120, %p121
    %p123 = scmp.ne.s32.totalorder %s115, %s117
    %p124 = scmp.eq.s32.totalorder %s23, 1
    %p125 = por %p123, %p124
    %p126 = scmp.ne.s32.totalorder %s117, %s118
    %p127 = scmp.eq.s32.totalorder %s23, 0
    %p128 = por %p126, %p127
    %p129 = scmp.ne.s32.totalorder %s117, %s118
    %p130 = scmp.eq.s32.totalorder %s24, 1
    %p131 = por %p129, %p130
    %p133 = scmp.ne.s32.totalorder %s118, %s132
    %p134 = scmp.eq.s32.totalorder %s24, 0
    %p135 = por %p133, %p134
    %s137 = sadd.s32 %s136, 1
    %p140 = scmp.eq.s32.totalorder %s18, 1
    %p141 = scmp.ne.s32.totalorder %s136, %s138
    %p142 = scmp.eq.s32.totalorder %s18, 0
    %p143 = por %p141, %p142
    %p144 = scmp.ne.s32.totalorder %s136, %s138
    %p145 = scmp.eq.s32.totalorder %s23, 1
    %p146 = por %p144, %p145
    %p147 = scmp.ne.s32.totalorder %s138, %s139
    %p148 = scmp.eq.s32.totalorder %s23, 0
    %p149 = por %p147, %p148
    %p150 = scmp.ne.s32.totalorder %s138, %s139
    %p151 = scmp.eq.s32.totalorder %s24, 1
    %p152 = por %p150, %p151
    %p154 = scmp.ne.s32.totalorder %s139, %s153
    %p155 = scmp.eq.s32.totalorder %s24, 0
    %p156 = por %p154, %p155
    %s158 = sadd.s32 %s157, 1
    %p161 = scmp.eq.s32.totalorder %s18, 1
    %p162 = scmp.ne.s32.totalorder %s157, %s159
    %p163 = scmp.eq.s32.totalorder %s18, 0
    %p164 = por %p162, %p163
    %p165 = scmp.ne.s32.totalorder %s157, %s159
    %p166 = scmp.eq.s32.totalorder %s23, 1
    %p167 = por %p165, %p166
    %p168 = scmp.ne.s32.totalorder %s159, %s160
    %p169 = scmp.eq.s32.totalorder %s23, 0
    %p170 = por %p168, %p169
    %p171 = scmp.ne.s32.totalorder %s159, %s160
    %p172 = scmp.eq.s32.totalorder %s24, 1
    %p173 = por %p171, %p172
    %p175 = scmp.ne.s32.totalorder %s160, %s174
    %p176 = scmp.eq.s32.totalorder %s24, 0
    %p177 = por %p175, %p176
    %s179 = sadd.s32 %s178, 1
    %p182 = scmp.eq.s32.totalorder %s18, 1
    %p183 = scmp.ne.s32.totalorder %s178, %s180
    %p184 = scmp.eq.s32.totalorder %s18, 0
    %p185 = por %p183, %p184
    %p186 = scmp.ne.s32.totalorder %s178, %s180
    %p187 = scmp.eq.s32.totalorder %s23, 1
    %p188 = por %p186, %p187
    %p189 = scmp.ne.s32.totalorder %s180, %s181
    %p190 = scmp.eq.s32.totalorder %s23, 0
    %p191 = por %p189, %p190
    %p192 = scmp.ne.s32.totalorder %s180, %s181
    %p193 = scmp.eq.s32.totalorder %s24, 1
    %p194 = por %p192, %p193
    %p196 = scmp.ne.s32.totalorder %s181, %s195
    %p197 = scmp.eq.s32.totalorder %s24, 0
    %p198 = por %p196, %p197
    %s200 = sadd.s32 %s199, 1
    %p203 = scmp.eq.s32.totalorder %s18, 1
    %p204 = scmp.ne.s32.totalorder %s199, %s201
    %p205 = scmp.eq.s32.totalorder %s18, 0
    %p206 = por %p204, %p205
    %p207 = scmp.ne.s32.totalorder %s199, %s201
    %p208 = scmp.eq.s32.totalorder %s23, 1
    %p209 = por %p207, %p208
    %p210 = scmp.ne.s32.totalorder %s201, %s202
    %p211 = scmp.eq.s32.totalorder %s23, 0
    %p212 = por %p210, %p211
    %p213 = scmp.ne.s32.totalorder %s201, %s202
    %p214 = scmp.eq.s32.totalorder %s24, 1
    %p215 = por %p213, %p214
    %p217 = scmp.ne.s32.totalorder %s202, %s216
    %p218 = scmp.eq.s32.totalorder %s24, 0
    %p219 = por %p217, %p218
    %s221 = sadd.s32 %s220, 1
    %p224 = scmp.eq.s32.totalorder %s18, 1
    %p225 = scmp.ne.s32.totalorder %s220, %s222
    %p226 = scmp.eq.s32.totalorder %s18, 0
    %p227 = por %p225, %p226
    %p228 = scmp.ne.s32.totalorder %s220, %s222
    %p229 = scmp.eq.s32.totalorder %s23, 1
    %p230 = por %p228, %p229
    %p231 = scmp.ne.s32.totalorder %s222, %s223
    %p232 = scmp.eq.s32.totalorder %s23, 0
    %p233 = por %p231, %p232
    %p234 = scmp.ne.s32.totalorder %s222, %s223
    %p235 = scmp.eq.s32.totalorder %s24, 1
    %p236 = por %p234, %p235
    %p238 = scmp.ne.s32.totalorder %s223, %s237
    %p239 = scmp.eq.s32.totalorder %s24, 0
    %p240 = por %p238, %p239
    %s242 = sadd.s32 %s241, 1
    %p245 = scmp.eq.s32.totalorder %s18, 1
    %p246 = scmp.ne.s32.totalorder %s241, %s243
    %p247 = scmp.eq.s32.totalorder %s18, 0
    %p248 = por %p246, %p247
    %p249 = scmp.ne.s32.totalorder %s241, %s243
    %p250 = scmp.eq.s32.totalorder %s23, 1
    %p251 = por %p249, %p250
    %p252 = scmp.ne.s32.totalorder %s243, %s244
    %p253 = scmp.eq.s32.totalorder %s23, 0
    %p254 = por %p252, %p253
    %p255 = scmp.ne.s32.totalorder %s243, %s244
    %p256 = scmp.eq.s32.totalorder %s24, 1
    %p257 = por %p255, %p256
    %p259 = scmp.ne.s32.totalorder %s244, %s258
    %p260 = scmp.eq.s32.totalorder %s24, 0
    %p261 = por %p259, %p260
    %s263 = sadd.s32 %s262, 1
    %p266 = scmp.eq.s32.totalorder %s18, 1
    %p267 = scmp.ne.s32.totalorder %s262, %s264
    %p268 = scmp.eq.s32.totalorder %s18, 0
    %p269 = por %p267, %p268
    %p270 = scmp.ne.s32.totalorder %s262, %s264
    %p271 = scmp.eq.s32.totalorder %s23, 1
    %p272 = por %p270, %p271
    %p273 = scmp.ne.s32.totalorder %s264, %s265
    %p274 = scmp.eq.s32.totalorder %s23, 0
    %p275 = por %p273, %p274
    %p276 = scmp.ne.s32.totalorder %s264, %s265
    %p277 = scmp.eq.s32.totalorder %s24, 1
    %p278 = por %p276, %p277
    %p280 = scmp.ne.s32.totalorder %s265, %s279
    %p281 = scmp.eq.s32.totalorder %s24, 0
    %p282 = por %p280, %p281
    %s283 = ssub.s32 %s18, %s25
    %p284 = scmp.eq.s32.totalorder %s283, 0
    %s286 = sadd.s32 %s285, 1
    %s287 = scalar_select %p284, %s285, %s286
    %p290 = pneg %p284
    %p291 = scmp.eq.s32.totalorder %s18, 1
    %p292 = por %p290, %p291
    %p293 = scmp.ne.s32.totalorder %s285, %s288
    %p294 = scmp.eq.s32.totalorder %s18, 0
    %p295 = por %p293, %p294
    %p296 = scmp.ne.s32.totalorder %s285, %s288
    %p297 = scmp.eq.s32.totalorder %s23, 1
    %p298 = por %p296, %p297
    %p299 = scmp.ne.s32.totalorder %s288, %s289
    %p300 = scmp.eq.s32.totalorder %s23, 0
    %p301 = por %p299, %p300
    %p302 = scmp.ne.s32.totalorder %s288, %s289
    %p303 = scmp.eq.s32.totalorder %s24, 1
    %p304 = por %p302, %p303
    %p306 = scmp.ne.s32.totalorder %s289, %s305
    %p307 = scmp.eq.s32.totalorder %s24, 0
    %p308 = por %p306, %p307
    %p309 = scmp.le.s32.totalorder 1, %s18
    %p310 = scmp.lt.s32.totalorder %s18, 3
    %p311 = pnand %p309, %p310
    %p312 = pneg %p311
    // Predicated region
    $region9: #{model_forward.1} parent=5 // pred_check
      _
    $region10: #{model_forward.1} parent=5 // pred_check_branch
      %314 = sbr.rel (%p311) target = $region12
    $region11: #{model_forward.1} parent=5 // pred_region
      %s315 = ssub.s32 %s18, 1
      // Predicated region
      $region13: #{model_forward.1} parent=11 // pred_check
        %p316 = pneg %p65
      $region14: #{model_forward.1} parent=11 // pred_check_branch
        %318 = sbr.rel (%p316) target = $region16
      $region15: #{model_forward.1} parent=11 // pred_region
        _
      $region16: #{model_forward.1} parent=11 // pred_fallthru
        _
      // Predicated region
      $region17: #{model_forward.1} parent=11 // pred_check
        %p319 = pneg %p86
      $region18: #{model_forward.1} parent=11 // pred_check_branch
        %321 = sbr.rel (%p319) target = $region20
      $region19: #{model_forward.1} parent=11 // pred_region
        _
      $region20: #{model_forward.1} parent=11 // pred_fallthru
        _
      // Predicated region
      $region21: #{model_forward.1} parent=11 // pred_check
        %p322 = pneg %p107
      $region22: #{model_forward.1} parent=11 // pred_check_branch
        %324 = sbr.rel (%p322) target = $region24
      $region23: #{model_forward.1} parent=11 // pred_region
        _
      $region24: #{model_forward.1} parent=11 // pred_fallthru
        _
      // Predicated region
      $region25: #{model_forward.1} parent=11 // pred_check
        %p325 = pneg %p128
      $region26: #{model_forward.1} parent=11 // pred_check_branch
        %327 = sbr.rel (%p325) target = $region28
      $region27: #{model_forward.1} parent=11 // pred_region
        _
      $region28: #{model_forward.1} parent=11 // pred_fallthru
        _
      // Predicated region
      $region29: #{model_forward.1} parent=11 // pred_check
        %p328 = pneg %p149
      $region30: #{model_forward.1} parent=11 // pred_check_branch
        %330 = sbr.rel (%p328) target = $region32
      $region31: #{model_forward.1} parent=11 // pred_region
        _
      $region32: #{model_forward.1} parent=11 // pred_fallthru
        _
      // Predicated region
      $region33: #{model_forward.1} parent=11 // pred_check
        %p331 = pneg %p170
      $region34: #{model_forward.1} parent=11 // pred_check_branch
        %333 = sbr.rel (%p331) target = $region36
      $region35: #{model_forward.1} parent=11 // pred_region
        _
      $region36: #{model_forward.1} parent=11 // pred_fallthru
        _
      // Predicated region
      $region37: #{model_forward.1} parent=11 // pred_check
        %p334 = pneg %p191
      $region38: #{model_forward.1} parent=11 // pred_check_branch
        %336 = sbr.rel (%p334) target = $region40
      $region39: #{model_forward.1} parent=11 // pred_region
        _
      $region40: #{model_forward.1} parent=11 // pred_fallthru
        _
      // Predicated region
      $region41: #{model_forward.1} parent=11 // pred_check
        %p337 = pneg %p212
      $region42: #{model_forward.1} parent=11 // pred_check_branch
        %339 = sbr.rel (%p337) target = $region44
      $region43: #{model_forward.1} parent=11 // pred_region
        _
      $region44: #{model_forward.1} parent=11 // pred_fallthru
        _
      // Predicated region
      $region45: #{model_forward.1} parent=11 // pred_check
        %p340 = pneg %p233
      $region46: #{model_forward.1} parent=11 // pred_check_branch
        %342 = sbr.rel (%p340) target = $region48
      $region47: #{model_forward.1} parent=11 // pred_region
        _
      $region48: #{model_forward.1} parent=11 // pred_fallthru
        _
      // Predicated region
      $region49: #{model_forward.1} parent=11 // pred_check
        %p343 = pneg %p254
      $region50: #{model_forward.1} parent=11 // pred_check_branch
        %345 = sbr.rel (%p343) target = $region52
      $region51: #{model_forward.1} parent=11 // pred_region
        _
      $region52: #{model_forward.1} parent=11 // pred_fallthru
        _
      // Predicated region
      $region53: #{model_forward.1} parent=11 // pred_check
        %p346 = pneg %p275
      $region54: #{model_forward.1} parent=11 // pred_check_branch
        %348 = sbr.rel (%p346) target = $region56
      $region55: #{model_forward.1} parent=11 // pred_region
        _
      $region56: #{model_forward.1} parent=11 // pred_fallthru
        _
    $region12: #{model_forward.1} parent=5 // pred_fallthru
      _
    %p349 = scmp.lt.s32.totalorder %s18, 2
    // Predicated region
    $region57: #{model_forward.1} parent=5 // pred_check
      %p350 = pneg %p349
    $region58: #{model_forward.1} parent=5 // pred_check_branch
      %352 = sbr.rel (%p350) target = $region60
    $region59: #{model_forward.1} parent=5 // pred_region
      // Predicated region
      $region61: #{model_forward.1} parent=59 // pred_check
        %p353 = pneg %p38
      $region62: #{model_forward.1} parent=59 // pred_check_branch
        %355 = sbr.rel (%p353) target = $region64
      $region63: #{model_forward.1} parent=59 // pred_region
        %s356 = smul.u32 9, %s18
        %p357 = scmp.lt.s32.totalorder %s356, 17
        %s358 = scalar_select %p357, %s356, 17
        %s359 = smul.addr %s358, 4
        %s360 = scalar_lea.vmem %s0, %s359
        %s361 = smul.u32 9, %s18
      $region64: #{model_forward.1} parent=59 // pred_fallthru
        _
    $region60: #{model_forward.1} parent=5 // pred_fallthru
      _
    %p362 = scmp.le.s32.totalorder 1, %s18
    %p363 = scmp.lt.s32.totalorder %s18, 3
    %p364 = pnand %p362, %p363
    %p365 = pneg %p364
    // Predicated region
    $region65: #{model_forward.1} parent=5 // pred_check
      _
    $region66: #{model_forward.1} parent=5 // pred_check_branch
      %367 = sbr.rel (%p364) target = $region68
    $region67: #{model_forward.1} parent=5 // pred_region
      %s368 = ssub.s32 %s18, 1
      %s369 = smul.u32 9, %s23
      %p370 = scmp.lt.s32.totalorder %s369, 17
      %s371 = scalar_select %p370, %s369, 17
      %s372 = smul.addr %s371, 4
      %s373 = scalar_lea.vmem %s0, %s372
      %p374 = pneg %p44
      %p375 = pneg %p41
      %p376 = pneg %p65
      %p377 = pneg %p62
      %p378 = pneg %p86
      %p379 = pneg %p83
      %p380 = pneg %p107
      %p381 = pneg %p104
      %p382 = pneg %p128
      %p383 = pneg %p125
      %p384 = pneg %p149
      %p385 = pneg %p146
      %p386 = pneg %p170
      %p387 = pneg %p167
      %p388 = pneg %p191
      %p389 = pneg %p188
      %p390 = pneg %p212
      %p391 = pneg %p209
      %p392 = pneg %p233
      %p393 = pneg %p230
      %p394 = pneg %p254
      %p395 = pneg %p251
      %p396 = pneg %p275
      %p397 = pneg %p272
      %p398 = pneg %p301
      %p399 = pneg %p298
      %p400 = scmp.lt.s32.totalorder %s23, 1
      %s401 = scalar_select %p400, %s23, 1
      %s402 = smul.addr %s401, 4
      %s403 = scalar_lea.vmem %s12, %s402
      %s404 = smul.u32 9, %s23
      %p405 = scmp.lt.s32.totalorder %s404, 17
      %s406 = scalar_select %p405, %s404, 17
      %s407 = smul.addr %s406, 4
      %s408 = scalar_lea.vmem %s0, %s407
      %s409 = smul.u32 9, %s23
      %p410 = scmp.lt.s32.totalorder %s23, 1
      %s411 = scalar_select %p410, %s23, 1
      %s412 = smul.addr %s411, 4
      %s413 = scalar_lea.vmem %s12, %s412
      %v415 = vld [vmem:[%s408] sm:$0xf]
      %v416 = vld [vmem:[%s408 + $0x4] sm:$0xf]
      %v417 = vld [vmem:[%s408 + $0x8] sm:$0xf]
      %v418 = vld [vmem:[%s408 + $0xc] sm:$0xf]
      %v419 = vld [vmem:[%s408 + $0x10] sm:$0xf]
      %v420 = vld [vmem:[%s408 + $0x14] sm:$0xf]
      %v421 = vld [vmem:[%s408 + $0x18] sm:$0xf]
      %v422 = vld [vmem:[%s408 + $0x1c] sm:$0xf]
      %v423 = vld [vmem:[%s408 + $0x20] sm:$0xf]
      %v424 = vld [vmem:[%s2] sm:$0x3]
      %v425 = vld [vmem:[%s1] sm:$0xff]
      %v426 = vld [vmem:[%s1 + $0x8] sm:$0xff]
      %v427 = vld [vmem:[%s1 + $0x10] sm:$0xff]
      %v428 = vld [vmem:[%s1 + $0x18] sm:$0xff]
      %v429 = vld [vmem:[%s1 + $0x20] sm:$0xff]
      %v430 = vld [vmem:[%s1 + $0x28] sm:$0xff]
      %s431 = scalar_lea.vmem %s1, 48
      %v432 = vld [vmem:[%s431] sm:$0xff]
      %v433 = vld [vmem:[%s431 + $0x8] sm:$0xff]
      %v434 = vld [vmem:[%s431 + $0x10] sm:$0xff]
      %v435 = vld [vmem:[%s431 + $0x18] sm:$0xff]
      %v436 = vld [vmem:[%s431 + $0x20] sm:$0xff]
      %v437 = vld [vmem:[%s431 + $0x28] sm:$0xff]
      %v447 = vunpack.c.l.b16 %v415
      %v448 = vunpack.c.l.b16 %v416
      %v449 = vunpack.c.l.b16 %v417
      %v450 = vunpack.c.l.b16 %v418
      %v451 = vunpack.c.l.b16 %v419
      %v452 = vunpack.c.l.b16 %v420
      %v453 = vunpack.c.l.b16 %v421
      %v454 = vunpack.c.l.b16 %v422
      %v455 = vunpack.c.l.b16 %v423
      %v456 = vpack.c.b16 %v448, %v447
      %v457 = vpack.c.b16 %v450, %v449
      %v458 = vpack.c.b16 %v452, %v451
      %v459 = vpack.c.b16 %v454, %v453
      %v460 = vpack.c.b16 %v455, %v455
      %vm461 = vsmask.f32 7424
      %v463 = vshrl.u32 %v456, 16
      %v465 = vshll.u32 %v456, 16
      %v467 = vrot.slane %v465, 1
      %v468 = vor.u32 %v463, %v467
      %v470 = vshll.u32 %v457, 16
      %v472 = vrot.slane %v470, 1
      %v473 = vsel %vm461, %v468, %v472
      %v474 = vshrl.u32 %v457, 16
      %v476 = vor.u32 %v474, %v472
      %v478 = vshll.u32 %v458, 16
      %v480 = vrot.slane %v478, 1
      %v481 = vsel %vm461, %v476, %v480
      %v482 = vshrl.u32 %v458, 16
      %v484 = vor.u32 %v482, %v480
      %v486 = vshll.u32 %v459, 16
      %v488 = vrot.slane %v486, 1
      %v489 = vsel %vm461, %v484, %v488
      %v490 = vshrl.u32 %v459, 16
      %v492 = vor.u32 %v490, %v488
      %v494 = vshll.u32 %v460, 16
      %v496 = vrot.slane %v494, 1
      %v497 = vsel %vm461, %v492, %v496
      %v498 = vshrl.u32 %v460, 16
      %v500 = vor.u32 %v498, %v496
      %v507 = vunpack.c.l.b16 %v432
      %v508 = vunpack.c.h.b16 %v432
      %v509 = vunpack.c.l.b16 %v433
      %v510 = vunpack.c.h.b16 %v433
      %v511 = vunpack.c.l.b16 %v434
      %v512 = vunpack.c.h.b16 %v434
      %v513 = vunpack.c.l.b16 %v435
      %v514 = vunpack.c.h.b16 %v435
      %v515 = vunpack.c.l.b16 %v436
      %v516 = vunpack.c.h.b16 %v436
      %v517 = vunpack.c.l.b16 %v437
      %v518 = vunpack.c.h.b16 %v437
      %v519 = vpack.c.b16 %v509, %v507
      %v520 = vpack.c.b16 %v510, %v508
      %v521 = vpack.c.b16 %v513, %v511
      %v522 = vpack.c.b16 %v514, %v512
      %v523 = vpack.c.b16 %v517, %v515
      %v524 = vpack.c.b16 %v518, %v516
      %vm531 = vcmask 392192
      %v533 = vsel %vm531, %v473, 0
      %v536 = vsel %vm531, %v481, 0
      %v539 = vsel %vm531, %v489, 0
      %v542 = vsel %vm531, %v497, 0
      %v545 = vsel %vm531, %v500, 0
      %547 = vmatpush.bf16.msra.mxu0 0
      %548 = vmatpush.bf16.msra.mxu0 0
      %549 = vmatpush.bf16.msra.mxu0 0
      %550 = vmatpush.bf16.msra.mxu0 0
      %551 = vmatpush.bf16.msra.mxu0 0
      %552 = vmatpush.bf16.msra.mxu0 %v523
      %553 = vmatpush.bf16.msra.mxu0 %v521
      %554 = vmatpush.bf16.msra.mxu0 %v519
      %555 = vmatmul.bf16.gmra.mxu0 %v533
      %v556 = vpop.f32.mrf.mxu0
      %v557 = vadd.f32 0.0, %v556
      %v558 = vpop.f32.mrf.mxu0
      %v559 = vadd.f32 0.0, %v558
      %560 = vmatmul.bf16.gmra.mxu0 %v536
      %v561 = vpop.f32.mrf.mxu0
      %v562 = vadd.f32 0.0, %v561
      %v563 = vpop.f32.mrf.mxu0
      %v564 = vadd.f32 0.0, %v563
      %565 = vmatmul.bf16.gmra.mxu0 %v539
      %v566 = vpop.f32.mrf.mxu0
      %v567 = vadd.f32 0.0, %v566
      %v568 = vpop.f32.mrf.mxu0
      %v569 = vadd.f32 0.0, %v568
      %570 = vmatmul.bf16.gmra.mxu0 %v542
      %v571 = vpop.f32.mrf.mxu0
      %v572 = vadd.f32 0.0, %v571
      %v573 = vpop.f32.mrf.mxu0
      %v574 = vadd.f32 0.0, %v573
      %575 = vmatmul.bf16.gmra.mxu0 %v545
      %v576 = vpop.f32.mrf.mxu0
      %v577 = vadd.f32 0.0, %v576
      %v578 = vpop.f32.mrf.mxu0
      %579 = vdwg.mxu0
      %580 = vmatpush.bf16.msra.mxu0 0
      %581 = vmatpush.bf16.msra.mxu0 0
      %582 = vmatpush.bf16.msra.mxu0 0
      %583 = vmatpush.bf16.msra.mxu0 0
      %584 = vmatpush.bf16.msra.mxu0 0
      %585 = vmatpush.bf16.msra.mxu0 %v524
      %586 = vmatpush.bf16.msra.mxu0 %v522
      %587 = vmatpush.bf16.msra.mxu0 %v520
      %588 = vmatmul.bf16.gmra.mxu0 %v533
      %v589 = vpop.f32.mrf.mxu0
      %v590 = vadd.f32 0.0, %v589
      %v591 = vpop.f32.mrf.mxu0
      %v592 = vadd.f32 0.0, %v591
      %593 = vmatmul.bf16.gmra.mxu0 %v536
      %v594 = vpop.f32.mrf.mxu0
      %v595 = vadd.f32 0.0, %v594
      %v596 = vpop.f32.mrf.mxu0
      %v597 = vadd.f32 0.0, %v596
      %598 = vmatmul.bf16.gmra.mxu0 %v539
      %v599 = vpop.f32.mrf.mxu0
      %v600 = vadd.f32 0.0, %v599
      %v601 = vpop.f32.mrf.mxu0
      %v602 = vadd.f32 0.0, %v601
      %603 = vmatmul.bf16.gmra.mxu0 %v542
      %v604 = vpop.f32.mrf.mxu0
      %v605 = vadd.f32 0.0, %v604
      %v606 = vpop.f32.mrf.mxu0
      %v607 = vadd.f32 0.0, %v606
      %608 = vmatmul.bf16.gmra.mxu0 %v545
      %v609 = vpop.f32.mrf.mxu0
      %v610 = vadd.f32 0.0, %v609
      %v611 = vpop.f32.mrf.mxu0
      %612 = vdwg.mxu0
      %v619 = vunpack.c.l.b16 %v425
      %v620 = vunpack.c.h.b16 %v425
      %v621 = vunpack.c.l.b16 %v426
      %v622 = vunpack.c.h.b16 %v426
      %v623 = vunpack.c.l.b16 %v427
      %v624 = vunpack.c.h.b16 %v427
      %v625 = vunpack.c.l.b16 %v428
      %v626 = vunpack.c.h.b16 %v428
      %v627 = vunpack.c.l.b16 %v429
      %v628 = vunpack.c.h.b16 %v429
      %v629 = vunpack.c.l.b16 %v430
      %v630 = vunpack.c.h.b16 %v430
      %v631 = vpack.c.b16 %v621, %v619
      %v632 = vpack.c.b16 %v622, %v620
      %v633 = vpack.c.b16 %v625, %v623
      %v634 = vpack.c.b16 %v626, %v624
      %v635 = vpack.c.b16 %v629, %v627
      %v636 = vpack.c.b16 %v630, %v628
      %v643 = vsel %vm531, %v456, 0
      %v645 = vsel %vm531, %v457, 0
      %v647 = vsel %vm531, %v458, 0
      %v649 = vsel %vm531, %v459, 0
      %v651 = vsel %vm531, %v460, 0
      %653 = vmatpush.bf16.msra.mxu0 0
      %654 = vmatpush.bf16.msra.mxu0 0
      %655 = vmatpush.bf16.msra.mxu0 0
      %656 = vmatpush.bf16.msra.mxu0 0
      %657 = vmatpush.bf16.msra.mxu0 0
      %658 = vmatpush.bf16.msra.mxu0 %v635
      %659 = vmatpush.bf16.msra.mxu0 %v633
      %660 = vmatpush.bf16.msra.mxu0 %v631
      %661 = vmatmul.bf16.gmra.mxu0 %v643
      %v662 = vpop.f32.mrf.mxu0
      %v663 = vadd.f32 %v557, %v662
      %v664 = vpop.f32.mrf.mxu0
      %v665 = vadd.f32 %v559, %v664
      %666 = vmatmul.bf16.gmra.mxu0 %v645
      %v667 = vpop.f32.mrf.mxu0
      %v668 = vadd.f32 %v562, %v667
      %v669 = vpop.f32.mrf.mxu0
      %v670 = vadd.f32 %v564, %v669
      %671 = vmatmul.bf16.gmra.mxu0 %v647
      %v672 = vpop.f32.mrf.mxu0
      %v673 = vadd.f32 %v567, %v672
      %v674 = vpop.f32.mrf.mxu0
      %v675 = vadd.f32 %v569, %v674
      %676 = vmatmul.bf16.gmra.mxu0 %v649
      %v677 = vpop.f32.mrf.mxu0
      %v678 = vadd.f32 %v572, %v677
      %v679 = vpop.f32.mrf.mxu0
      %v680 = vadd.f32 %v574, %v679
      %681 = vmatmul.bf16.gmra.mxu0 %v651
      %v682 = vpop.f32.mrf.mxu0
      %v683 = vadd.f32 %v577, %v682
      %v684 = vpop.f32.mrf.mxu0
      %685 = vdwg.mxu0
      %686 = vmatpush.bf16.msra.mxu0 0
      %687 = vmatpush.bf16.msra.mxu0 0
      %688 = vmatpush.bf16.msra.mxu0 0
      %689 = vmatpush.bf16.msra.mxu0 0
      %690 = vmatpush.bf16.msra.mxu0 0
      %691 = vmatpush.bf16.msra.mxu0 %v636
      %692 = vmatpush.bf16.msra.mxu0 %v634
      %693 = vmatpush.bf16.msra.mxu0 %v632
      %694 = vmatmul.bf16.gmra.mxu0 %v643
      %v695 = vpop.f32.mrf.mxu0
      %v696 = vadd.f32 %v590, %v695
      %v697 = vpop.f32.mrf.mxu0
      %v698 = vadd.f32 %v592, %v697
      %699 = vmatmul.bf16.gmra.mxu0 %v645
      %v700 = vpop.f32.mrf.mxu0
      %v701 = vadd.f32 %v595, %v700
      %v702 = vpop.f32.mrf.mxu0
      %v703 = vadd.f32 %v597, %v702
      %704 = vmatmul.bf16.gmra.mxu0 %v647
      %v705 = vpop.f32.mrf.mxu0
      %v706 = vadd.f32 %v600, %v705
      %v707 = vpop.f32.mrf.mxu0
      %v708 = vadd.f32 %v602, %v707
      %709 = vmatmul.bf16.gmra.mxu0 %v649
      %v710 = vpop.f32.mrf.mxu0
      %v711 = vadd.f32 %v605, %v710
      %v712 = vpop.f32.mrf.mxu0
      %v713 = vadd.f32 %v607, %v712
      %714 = vmatmul.bf16.gmra.mxu0 %v651
      %v715 = vpop.f32.mrf.mxu0
      %v716 = vadd.f32 %v610, %v715
      %v717 = vpop.f32.mrf.mxu0
      %718 = vdwg.mxu0
      %s719 = scalar_lea.vmem %s1, 96
      %v720 = vld [vmem:[%s719] sm:$0xff]
      %v721 = vld [vmem:[%s719 + $0x8] sm:$0xff]
      %v722 = vld [vmem:[%s719 + $0x10] sm:$0xff]
      %v723 = vld [vmem:[%s719 + $0x18] sm:$0xff]
      %v724 = vld [vmem:[%s719 + $0x20] sm:$0xff]
      %v725 = vld [vmem:[%s719 + $0x28] sm:$0xff]
      %vm726 = vcmask 1046528
      %v727 = vrot.slane %v456, 1
      %v728 = vrot.slane %v457, 1
      %v729 = vsel %vm726, %v727, %v728
      %v730 = vrot.slane %v458, 1
      %v731 = vsel %vm726, %v728, %v730
      %v732 = vrot.slane %v459, 1
      %v733 = vsel %vm726, %v730, %v732
      %v734 = vrot.slane %v460, 1
      %v735 = vsel %vm726, %v732, %v734
      %v742 = vunpack.c.l.b16 %v720
      %v743 = vunpack.c.h.b16 %v720
      %v744 = vunpack.c.l.b16 %v721
      %v745 = vunpack.c.h.b16 %v721
      %v746 = vunpack.c.l.b16 %v722
      %v747 = vunpack.c.h.b16 %v722
      %v748 = vunpack.c.l.b16 %v723
      %v749 = vunpack.c.h.b16 %v723
      %v750 = vunpack.c.l.b16 %v724
      %v751 = vunpack.c.h.b16 %v724
      %v752 = vunpack.c.l.b16 %v725
      %v753 = vunpack.c.h.b16 %v725
      %v754 = vpack.c.b16 %v744, %v742
      %v755 = vpack.c.b16 %v745, %v743
      %v756 = vpack.c.b16 %v748, %v746
      %v757 = vpack.c.b16 %v749, %v747
      %v758 = vpack.c.b16 %v752, %v750
      %v759 = vpack.c.b16 %v753, %v751
      %v767 = vsel %vm531, %v729, 0
      %v770 = vsel %vm531, %v731, 0
      %v773 = vsel %vm531, %v733, 0
      %v776 = vsel %vm531, %v735, 0
      %v779 = vsel %vm531, %v734, 0
      %781 = vmatpush.bf16.msra.mxu0 0
      %782 = vmatpush.bf16.msra.mxu0 0
      %783 = vmatpush.bf16.msra.mxu0 0
      %784 = vmatpush.bf16.msra.mxu0 0
      %785 = vmatpush.bf16.msra.mxu0 0
      %786 = vmatpush.bf16.msra.mxu0 %v758
      %787 = vmatpush.bf16.msra.mxu0 %v756
      %788 = vmatpush.bf16.msra.mxu0 %v754
      %789 = vmatmul.bf16.gmra.mxu0 %v767
      %v790 = vpop.f32.mrf.mxu0
      %v791 = vadd.f32 0.0, %v790
      %v792 = vpop.f32.mrf.mxu0
      %v793 = vadd.f32 0.0, %v792
      %794 = vmatmul.bf16.gmra.mxu0 %v770
      %v795 = vpop.f32.mrf.mxu0
      %v796 = vadd.f32 0.0, %v795
      %v797 = vpop.f32.mrf.mxu0
      %v798 = vadd.f32 0.0, %v797
      %799 = vmatmul.bf16.gmra.mxu0 %v773
      %v800 = vpop.f32.mrf.mxu0
      %v801 = vadd.f32 0.0, %v800
      %v802 = vpop.f32.mrf.mxu0
      %v803 = vadd.f32 0.0, %v802
      %804 = vmatmul.bf16.gmra.mxu0 %v776
      %v805 = vpop.f32.mrf.mxu0
      %v806 = vadd.f32 0.0, %v805
      %v807 = vpop.f32.mrf.mxu0
      %v808 = vadd.f32 0.0, %v807
      %809 = vmatmul.bf16.gmra.mxu0 %v779
      %v810 = vpop.f32.mrf.mxu0
      %v811 = vadd.f32 0.0, %v810
      %v812 = vpop.f32.mrf.mxu0
      %813 = vdwg.mxu0
      %814 = vmatpush.bf16.msra.mxu0 0
      %815 = vmatpush.bf16.msra.mxu0 0
      %816 = vmatpush.bf16.msra.mxu0 0
      %817 = vmatpush.bf16.msra.mxu0 0
      %818 = vmatpush.bf16.msra.mxu0 0
      %819 = vmatpush.bf16.msra.mxu0 %v759
      %820 = vmatpush.bf16.msra.mxu0 %v757
      %821 = vmatpush.bf16.msra.mxu0 %v755
      %822 = vmatmul.bf16.gmra.mxu0 %v767
      %v823 = vpop.f32.mrf.mxu0
      %v824 = vadd.f32 0.0, %v823
      %v825 = vpop.f32.mrf.mxu0
      %v826 = vadd.f32 0.0, %v825
      %827 = vmatmul.bf16.gmra.mxu0 %v770
      %v828 = vpop.f32.mrf.mxu0
      %v829 = vadd.f32 0.0, %v828
      %v830 = vpop.f32.mrf.mxu0
      %v831 = vadd.f32 0.0, %v830
      %832 = vmatmul.bf16.gmra.mxu0 %v773
      %v833 = vpop.f32.mrf.mxu0
      %v834 = vadd.f32 0.0, %v833
      %v835 = vpop.f32.mrf.mxu0
      %v836 = vadd.f32 0.0, %v835
      %837 = vmatmul.bf16.gmra.mxu0 %v776
      %v838 = vpop.f32.mrf.mxu0
      %v839 = vadd.f32 0.0, %v838
      %v840 = vpop.f32.mrf.mxu0
      %v841 = vadd.f32 0.0, %v840
      %842 = vmatmul.bf16.gmra.mxu0 %v779
      %v843 = vpop.f32.mrf.mxu0
      %v844 = vadd.f32 0.0, %v843
      %v845 = vpop.f32.mrf.mxu0
      %846 = vdwg.mxu0
      %v847 = vadd.f32 %v663, %v791
      %v848 = vadd.f32 %v696, %v824
      %v849 = vadd.f32 %v665, %v793
      %v850 = vadd.f32 %v698, %v826
      %v851 = vadd.f32 %v668, %v796
      %v852 = vadd.f32 %v701, %v829
      %v853 = vadd.f32 %v670, %v798
      %v854 = vadd.f32 %v703, %v831
      %v855 = vadd.f32 %v673, %v801
      %v856 = vadd.f32 %v706, %v834
      %v857 = vadd.f32 %v675, %v803
      %v858 = vadd.f32 %v708, %v836
      %v859 = vadd.f32 %v678, %v806
      %v860 = vadd.f32 %v711, %v839
      %v861 = vadd.f32 %v680, %v808
      %v862 = vadd.f32 %v713, %v841
      %v863 = vadd.f32 %v683, %v811
      %v864 = vadd.f32 %v716, %v844
      %v866 = vperm.slane %v424, 0
      %v867 = vperm.slane %v424, 1
      %v870 = vadd.f32 %v847, %v866
      %v871 = vadd.f32 %v848, %v867
      %v872 = vadd.f32 %v849, %v866
      %v873 = vadd.f32 %v850, %v867
      %v874 = vadd.f32 %v851, %v866
      %v875 = vadd.f32 %v852, %v867
      %v876 = vadd.f32 %v853, %v866
      %v877 = vadd.f32 %v854, %v867
      %v878 = vadd.f32 %v855, %v866
      %v879 = vadd.f32 %v856, %v867
      %v880 = vadd.f32 %v857, %v866
      %v881 = vadd.f32 %v858, %v867
      %v882 = vadd.f32 %v859, %v866
      %v883 = vadd.f32 %v860, %v867
      %v884 = vadd.f32 %v861, %v866
      %v885 = vadd.f32 %v862, %v867
      %v886 = vadd.f32 %v863, %v866
      %v887 = vadd.f32 %v864, %v867
      %v888 = vmax.f32 %v870, 0.0
      %v889 = vmax.f32 %v871, 0.0
      %v890 = vmax.f32 %v872, 0.0
      %v891 = vmax.f32 %v873, 0.0
      %v892 = vmax.f32 %v874, 0.0
      %v893 = vmax.f32 %v875, 0.0
      %v894 = vmax.f32 %v876, 0.0
      %v895 = vmax.f32 %v877, 0.0
      %v896 = vmax.f32 %v878, 0.0
      %v897 = vmax.f32 %v879, 0.0
      %v898 = vmax.f32 %v880, 0.0
      %v899 = vmax.f32 %v881, 0.0
      %v900 = vmax.f32 %v882, 0.0
      %v901 = vmax.f32 %v883, 0.0
      %v902 = vmax.f32 %v884, 0.0
      %v903 = vmax.f32 %v885, 0.0
      %v904 = vmax.f32 %v886, 0.0
      %v905 = vmax.f32 %v887, 0.0
      %v906 = vmax.f32 %v888, %v889
      %v907 = vmax.f32 %v890, %v891
      %v908 = vmax.f32 %v892, %v893
      %v909 = vmax.f32 %v894, %v895
      %v910 = vmax.f32 %v896, %v897
      %v911 = vmax.f32 %v898, %v899
      %v912 = vmax.f32 %v900, %v901
      %v913 = vmax.f32 %v902, %v903
      %v914 = vmax.f32 %v904, %v905
      %v915 = vpack.c.bf16 %v907, %v906
      %v916 = vpack.c.bf16 %v909, %v908
      %v917 = vpack.c.bf16 %v911, %v910
      %v918 = vpack.c.bf16 %v913, %v912
      %v919 = vpack.c.bf16 %v914, %v914
      %v920 = vld [vmem:[%s3] sm:$0xf]
      %v921 = vld [vmem:[%s3 + $0x4] sm:$0xf]
      %v922 = vld [vmem:[%s3 + $0x8] sm:$0xf]
      %v923 = vld [vmem:[%s3 + $0xc] sm:$0xf]
      %v924 = vld [vmem:[%s3 + $0x10] sm:$0xf]
      %v930 = vunpack.c.l.b16 %v920
      %v931 = vunpack.c.l.b16 %v921
      %v932 = vunpack.c.l.b16 %v922
      %v933 = vunpack.c.l.b16 %v923
      %v934 = vunpack.c.l.b16 %v924
      %v935 = vpack.c.b16 %v931, %v930
      %v936 = vpack.c.b16 %v933, %v932
      %v937 = vpack.c.b16 %v934, %v934
      %vm938 = vcmask 572416
      %v940 = vsel %vm938, %v935, 0
      %v943 = vsel %vm938, %v936, 0
      %v946 = vsel %vm938, %v937, 0
      %vm948 = vcmask 1042432
      %v950 = vsel %vm948, %v919, 0
      %952 = vmatpush.bf16.msra.mxu0 0
      %953 = vmatpush.bf16.msra.mxu0 0
      %954 = vmatpush.bf16.msra.mxu0 0
      %955 = vmatpush.bf16.msra.mxu0 %v950
      %956 = vmatpush.bf16.msra.mxu0 %v918
      %957 = vmatpush.bf16.msra.mxu0 %v917
      %958 = vmatpush.bf16.msra.mxu0 %v916
      %959 = vmatpush.bf16.msra.mxu0 %v915
      %960 = vmatmul.bf16.gmra.mxu0 %v940
      %v961 = vpop.f32.mrf.mxu0
      %v962 = vadd.f32 0.0, %v961
      %v963 = vpop.f32.mrf.mxu0
      %v964 = vadd.f32 0.0, %v963
      %965 = vmatmul.bf16.gmra.mxu0 %v943
      %v966 = vpop.f32.mrf.mxu0
      %v967 = vadd.f32 0.0, %v966
      %v968 = vpop.f32.mrf.mxu0
      %v969 = vadd.f32 0.0, %v968
      %970 = vmatmul.bf16.gmra.mxu0 %v946
      %v971 = vpop.f32.mrf.mxu0
      %v972 = vadd.f32 0.0, %v971
      %v973 = vpop.f32.mrf.mxu0
      %974 = vdwg.mxu0
      %s975 = scalar_lea.vmem %s3, 20
      %v976 = vld [vmem:[%s975] sm:$0xf]
      %v977 = vld [vmem:[%s975 + $0x4] sm:$0xf]
      %v978 = vld [vmem:[%s975 + $0x8] sm:$0xf]
      %v979 = vld [vmem:[%s975 + $0xc] sm:$0xf]
      %v980 = vld [vmem:[%s975 + $0x10] sm:$0xf]
      %v986 = vunpack.c.l.b16 %v976
      %v987 = vunpack.c.l.b16 %v977
      %v988 = vunpack.c.l.b16 %v978
      %v989 = vunpack.c.l.b16 %v979
      %v990 = vunpack.c.l.b16 %v980
      %v991 = vpack.c.b16 %v987, %v986
      %v992 = vpack.c.b16 %v989, %v988
      %v993 = vpack.c.b16 %v990, %v990
      %v995 = vsel %vm938, %v991, 0
      %v998 = vsel %vm938, %v992, 0
      %v1001 = vsel %vm938, %v993, 0
      %1003 = vmatpush.bf16.msra.mxu0 0
      %1004 = vmatpush.bf16.msra.mxu0 0
      %1005 = vmatpush.bf16.msra.mxu0 0
      %1006 = vmatpush.bf16.msra.mxu0 %v950
      %1007 = vmatpush.bf16.msra.mxu0 %v918
      %1008 = vmatpush.bf16.msra.mxu0 %v917
      %1009 = vmatpush.bf16.msra.mxu0 %v916
      %1010 = vmatpush.bf16.msra.mxu0 %v915
      %1011 = vmatmul.bf16.gmra.mxu0 %v995
      %v1012 = vpop.f32.mrf.mxu0
      %v1013 = vadd.f32 0.0, %v1012
      %v1014 = vpop.f32.mrf.mxu0
      %v1015 = vadd.f32 0.0, %v1014
      %1016 = vmatmul.bf16.gmra.mxu0 %v998
      %v1017 = vpop.f32.mrf.mxu0
      %v1018 = vadd.f32 0.0, %v1017
      %v1019 = vpop.f32.mrf.mxu0
      %v1020 = vadd.f32 0.0, %v1019
      %1021 = vmatmul.bf16.gmra.mxu0 %v1001
      %v1022 = vpop.f32.mrf.mxu0
      %v1023 = vadd.f32 0.0, %v1022
      %v1024 = vpop.f32.mrf.mxu0
      %1025 = vdwg.mxu0
      %v1026 = vmax.f32 %v962, %v1013
      %v1027 = vmax.f32 %v964, %v1015
      %v1028 = vmax.f32 %v967, %v1018
      %v1029 = vmax.f32 %v969, %v1020
      %v1030 = vmax.f32 %v972, %v1023
      %v1031 = vpack.c.bf16 %v1026, %v1026
      %v1032 = vpack.c.bf16 %v1027, %v1027
      %v1033 = vpack.c.bf16 %v1028, %v1028
      %v1034 = vpack.c.bf16 %v1029, %v1029
      %v1035 = vpack.c.bf16 %v1030, %v1030
      %v1036 = vld [vmem:[%s5] sm:$0x3]
      %v1037 = vld [vmem:[%s4] sm:$0xff]
      %v1038 = vld [vmem:[%s4 + $0x8] sm:$0xff]
      %v1039 = vld [vmem:[%s4 + $0x10] sm:$0xff]
      %v1040 = vld [vmem:[%s4 + $0x18] sm:$0xff]
      %v1041 = vld [vmem:[%s4 + $0x20] sm:$0xff]
      %v1042 = vld [vmem:[%s4 + $0x28] sm:$0xff]
      %v1043 = vld [vmem:[%s4 + $0x30] sm:$0xff]
      %v1044 = vld [vmem:[%s4 + $0x38] sm:$0xff]
      %v1045 = vld [vmem:[%s4 + $0x40] sm:$0xff]
      %v1046 = vld [vmem:[%s4 + $0x48] sm:$0xff]
      %v1047 = vld [vmem:[%s4 + $0x50] sm:$0xff]
      %v1048 = vld [vmem:[%s4 + $0x58] sm:$0xff]
      %v1049 = vld [vmem:[%s4 + $0x60] sm:$0xff]
      %v1050 = vld [vmem:[%s4 + $0x68] sm:$0xff]
      %v1051 = vld [vmem:[%s4 + $0x70] sm:$0xff]
      %v1052 = vld [vmem:[%s4 + $0x78] sm:$0xff]
      %s1053 = scalar_lea.vmem %s4, 128
      %v1054 = vld [vmem:[%s1053] sm:$0xff]
      %v1055 = vld [vmem:[%s1053 + $0x8] sm:$0xff]
      %v1056 = vld [vmem:[%s1053 + $0x10] sm:$0xff]
      %v1057 = vld [vmem:[%s1053 + $0x18] sm:$0xff]
      %v1058 = vld [vmem:[%s1053 + $0x20] sm:$0xff]
      %v1059 = vld [vmem:[%s1053 + $0x28] sm:$0xff]
      %v1060 = vld [vmem:[%s1053 + $0x30] sm:$0xff]
      %v1061 = vld [vmem:[%s1053 + $0x38] sm:$0xff]
      %v1062 = vld [vmem:[%s1053 + $0x40] sm:$0xff]
      %v1063 = vld [vmem:[%s1053 + $0x48] sm:$0xff]
      %v1064 = vld [vmem:[%s1053 + $0x50] sm:$0xff]
      %v1065 = vld [vmem:[%s1053 + $0x58] sm:$0xff]
      %v1066 = vld [vmem:[%s1053 + $0x60] sm:$0xff]
      %v1067 = vld [vmem:[%s1053 + $0x68] sm:$0xff]
      %v1068 = vld [vmem:[%s1053 + $0x70] sm:$0xff]
      %v1069 = vld [vmem:[%s1053 + $0x78] sm:$0xff]
      %v1075 = vunpack.c.l.b16 %v1031
      %v1076 = vunpack.c.l.b16 %v1032
      %v1077 = vunpack.c.l.b16 %v1033
      %v1078 = vunpack.c.l.b16 %v1034
      %v1079 = vunpack.c.l.b16 %v1035
      %v1080 = vpack.c.b16 %v1076, %v1075
      %v1081 = vpack.c.b16 %v1078, %v1077
      %v1082 = vpack.c.b16 %v1079, %v1079
      %v1084 = vshrl.u32 %v1080, 16
      %v1086 = vshll.u32 %v1080, 16
      %v1088 = vrot.slane %v1086, 1
      %v1089 = vor.u32 %v1084, %v1088
      %v1091 = vshll.u32 %v1081, 16
      %v1093 = vrot.slane %v1091, 1
      %v1094 = vsel %vm461, %v1089, %v1093
      %v1095 = vshrl.u32 %v1081, 16
      %v1097 = vor.u32 %v1095, %v1093
      %v1099 = vshll.u32 %v1082, 16
      %v1101 = vrot.slane %v1099, 1
      %v1102 = vsel %vm461, %v1097, %v1101
      %v1103 = vshrl.u32 %v1082, 16
      %v1105 = vor.u32 %v1103, %v1101
      %v1125 = vunpack.c.l.b16 %v1054
      %v1126 = vunpack.c.h.b16 %v1054
      %v1127 = vunpack.c.l.b16 %v1055
      %v1128 = vunpack.c.h.b16 %v1055
      %v1129 = vunpack.c.l.b16 %v1056
      %v1130 = vunpack.c.h.b16 %v1056
      %v1131 = vunpack.c.l.b16 %v1057
      %v1132 = vunpack.c.h.b16 %v1057
      %v1133 = vunpack.c.l.b16 %v1058
      %v1134 = vunpack.c.h.b16 %v1058
      %v1135 = vunpack.c.l.b16 %v1059
      %v1136 = vunpack.c.h.b16 %v1059
      %v1137 = vunpack.c.l.b16 %v1060
      %v1138 = vunpack.c.h.b16 %v1060
      %v1139 = vunpack.c.l.b16 %v1061
      %v1140 = vunpack.c.h.b16 %v1061
      %v1141 = vunpack.c.l.b16 %v1062
      %v1142 = vunpack.c.h.b16 %v1062
      %v1143 = vunpack.c.l.b16 %v1063
      %v1144 = vunpack.c.h.b16 %v1063
      %v1145 = vunpack.c.l.b16 %v1064
      %v1146 = vunpack.c.h.b16 %v1064
      %v1147 = vunpack.c.l.b16 %v1065
      %v1148 = vunpack.c.h.b16 %v1065
      %v1149 = vunpack.c.l.b16 %v1066
      %v1150 = vunpack.c.h.b16 %v1066
      %v1151 = vunpack.c.l.b16 %v1067
      %v1152 = vunpack.c.h.b16 %v1067
      %v1153 = vunpack.c.l.b16 %v1068
      %v1154 = vunpack.c.h.b16 %v1068
      %v1155 = vunpack.c.l.b16 %v1069
      %v1156 = vunpack.c.h.b16 %v1069
      %v1157 = vpack.c.b16 %v1127, %v1125
      %v1158 = vpack.c.b16 %v1128, %v1126
      %v1159 = vpack.c.b16 %v1131, %v1129
      %v1160 = vpack.c.b16 %v1132, %v1130
      %v1161 = vpack.c.b16 %v1135, %v1133
      %v1162 = vpack.c.b16 %v1136, %v1134
      %v1163 = vpack.c.b16 %v1139, %v1137
      %v1164 = vpack.c.b16 %v1140, %v1138
      %v1165 = vpack.c.b16 %v1143, %v1141
      %v1166 = vpack.c.b16 %v1144, %v1142
      %v1167 = vpack.c.b16 %v1147, %v1145
      %v1168 = vpack.c.b16 %v1148, %v1146
      %v1169 = vpack.c.b16 %v1151, %v1149
      %v1170 = vpack.c.b16 %v1152, %v1150
      %v1171 = vpack.c.b16 %v1155, %v1153
      %v1172 = vpack.c.b16 %v1156, %v1154
      %1189 = vmatpush.bf16.msra.mxu0 %v1171
      %1190 = vmatpush.bf16.msra.mxu0 %v1169
      %1191 = vmatpush.bf16.msra.mxu0 %v1167
      %1192 = vmatpush.bf16.msra.mxu0 %v1165
      %1193 = vmatpush.bf16.msra.mxu0 %v1163
      %1194 = vmatpush.bf16.msra.mxu0 %v1161
      %1195 = vmatpush.bf16.msra.mxu0 %v1159
      %1196 = vmatpush.bf16.msra.mxu0 %v1157
      %1197 = vmatmul.bf16.gmra.mxu0 %v1094
      %v1198 = vpop.f32.mrf.mxu0
      %v1199 = vadd.f32 0.0, %v1198
      %v1200 = vpop.f32.mrf.mxu0
      %v1201 = vadd.f32 0.0, %v1200
      %1202 = vmatmul.bf16.gmra.mxu0 %v1102
      %v1203 = vpop.f32.mrf.mxu0
      %v1204 = vadd.f32 0.0, %v1203
      %v1205 = vpop.f32.mrf.mxu0
      %v1206 = vadd.f32 0.0, %v1205
      %1207 = vmatmul.bf16.gmra.mxu0 %v1105
      %v1208 = vpop.f32.mrf.mxu0
      %v1209 = vadd.f32 0.0, %v1208
      %v1210 = vpop.f32.mrf.mxu0
      %1211 = vdwg.mxu0
      %1212 = vmatpush.bf16.msra.mxu0 %v1172
      %1213 = vmatpush.bf16.msra.mxu0 %v1170
      %1214 = vmatpush.bf16.msra.mxu0 %v1168
      %1215 = vmatpush.bf16.msra.mxu0 %v1166
      %1216 = vmatpush.bf16.msra.mxu0 %v1164
      %1217 = vmatpush.bf16.msra.mxu0 %v1162
      %1218 = vmatpush.bf16.msra.mxu0 %v1160
      %1219 = vmatpush.bf16.msra.mxu0 %v1158
      %1220 = vmatmul.bf16.gmra.mxu0 %v1094
      %v1221 = vpop.f32.mrf.mxu0
      %v1222 = vadd.f32 0.0, %v1221
      %v1223 = vpop.f32.mrf.mxu0
      %v1224 = vadd.f32 0.0, %v1223
      %1225 = vmatmul.bf16.gmra.mxu0 %v1102
      %v1226 = vpop.f32.mrf.mxu0
      %v1227 = vadd.f32 0.0, %v1226
      %v1228 = vpop.f32.mrf.mxu0
      %v1229 = vadd.f32 0.0, %v1228
      %1230 = vmatmul.bf16.gmra.mxu0 %v1105
      %v1231 = vpop.f32.mrf.mxu0
      %v1232 = vadd.f32 0.0, %v1231
      %v1233 = vpop.f32.mrf.mxu0
      %1234 = vdwg.mxu0
      %v1254 = vunpack.c.l.b16 %v1037
      %v1255 = vunpack.c.h.b16 %v1037
      %v1256 = vunpack.c.l.b16 %v1038
      %v1257 = vunpack.c.h.b16 %v1038
      %v1258 = vunpack.c.l.b16 %v1039
      %v1259 = vunpack.c.h.b16 %v1039
      %v1260 = vunpack.c.l.b16 %v1040
      %v1261 = vunpack.c.h.b16 %v1040
      %v1262 = vunpack.c.l.b16 %v1041
      %v1263 = vunpack.c.h.b16 %v1041
      %v1264 = vunpack.c.l.b16 %v1042
      %v1265 = vunpack.c.h.b16 %v1042
      %v1266 = vunpack.c.l.b16 %v1043
      %v1267 = vunpack.c.h.b16 %v1043
      %v1268 = vunpack.c.l.b16 %v1044
      %v1269 = vunpack.c.h.b16 %v1044
      %v1270 = vunpack.c.l.b16 %v1045
      %v1271 = vunpack.c.h.b16 %v1045
      %v1272 = vunpack.c.l.b16 %v1046
      %v1273 = vunpack.c.h.b16 %v1046
      %v1274 = vunpack.c.l.b16 %v1047
      %v1275 = vunpack.c.h.b16 %v1047
      %v1276 = vunpack.c.l.b16 %v1048
      %v1277 = vunpack.c.h.b16 %v1048
      %v1278 = vunpack.c.l.b16 %v1049
      %v1279 = vunpack.c.h.b16 %v1049
      %v1280 = vunpack.c.l.b16 %v1050
      %v1281 = vunpack.c.h.b16 %v1050
      %v1282 = vunpack.c.l.b16 %v1051
      %v1283 = vunpack.c.h.b16 %v1051
      %v1284 = vunpack.c.l.b16 %v1052
      %v1285 = vunpack.c.h.b16 %v1052
      %v1286 = vpack.c.b16 %v1256, %v1254
      %v1287 = vpack.c.b16 %v1257, %v1255
      %v1288 = vpack.c.b16 %v1260, %v1258
      %v1289 = vpack.c.b16 %v1261, %v1259
      %v1290 = vpack.c.b16 %v1264, %v1262
      %v1291 = vpack.c.b16 %v1265, %v1263
      %v1292 = vpack.c.b16 %v1268, %v1266
      %v1293 = vpack.c.b16 %v1269, %v1267
      %v1294 = vpack.c.b16 %v1272, %v1270
      %v1295 = vpack.c.b16 %v1273, %v1271
      %v1296 = vpack.c.b16 %v1276, %v1274
      %v1297 = vpack.c.b16 %v1277, %v1275
      %v1298 = vpack.c.b16 %v1280, %v1278
      %v1299 = vpack.c.b16 %v1281, %v1279
      %v1300 = vpack.c.b16 %v1284, %v1282
      %v1301 = vpack.c.b16 %v1285, %v1283
      %1318 = vmatpush.bf16.msra.mxu0 %v1300
      %1319 = vmatpush.bf16.msra.mxu0 %v1298
      %1320 = vmatpush.bf16.msra.mxu0 %v1296
      %1321 = vmatpush.bf16.msra.mxu0 %v1294
      %1322 = vmatpush.bf16.msra.mxu0 %v1292
      %1323 = vmatpush.bf16.msra.mxu0 %v1290
      %1324 = vmatpush.bf16.msra.mxu0 %v1288
      %1325 = vmatpush.bf16.msra.mxu0 %v1286
      %1326 = vmatmul.bf16.gmra.mxu0 %v1080
      %v1327 = vpop.f32.mrf.mxu0
      %v1328 = vadd.f32 %v1199, %v1327
      %v1329 = vpop.f32.mrf.mxu0
      %v1330 = vadd.f32 %v1201, %v1329
      %1331 = vmatmul.bf16.gmra.mxu0 %v1081
      %v1332 = vpop.f32.mrf.mxu0
      %v1333 = vadd.f32 %v1204, %v1332
      %v1334 = vpop.f32.mrf.mxu0
      %v1335 = vadd.f32 %v1206, %v1334
      %1336 = vmatmul.bf16.gmra.mxu0 %v1082
      %v1337 = vpop.f32.mrf.mxu0
      %v1338 = vadd.f32 %v1209, %v1337
      %v1339 = vpop.f32.mrf.mxu0
      %1340 = vdwg.mxu0
      %1341 = vmatpush.bf16.msra.mxu0 %v1301
      %1342 = vmatpush.bf16.msra.mxu0 %v1299
      %1343 = vmatpush.bf16.msra.mxu0 %v1297
      %1344 = vmatpush.bf16.msra.mxu0 %v1295
      %1345 = vmatpush.bf16.msra.mxu0 %v1293
      %1346 = vmatpush.bf16.msra.mxu0 %v1291
      %1347 = vmatpush.bf16.msra.mxu0 %v1289
      %1348 = vmatpush.bf16.msra.mxu0 %v1287
      %1349 = vmatmul.bf16.gmra.mxu0 %v1080
      %v1350 = vpop.f32.mrf.mxu0
      %v1351 = vadd.f32 %v1222, %v1350
      %v1352 = vpop.f32.mrf.mxu0
      %v1353 = vadd.f32 %v1224, %v1352
      %1354 = vmatmul.bf16.gmra.mxu0 %v1081
      %v1355 = vpop.f32.mrf.mxu0
      %v1356 = vadd.f32 %v1227, %v1355
      %v1357 = vpop.f32.mrf.mxu0
      %v1358 = vadd.f32 %v1229, %v1357
      %1359 = vmatmul.bf16.gmra.mxu0 %v1082
      %v1360 = vpop.f32.mrf.mxu0
      %v1361 = vadd.f32 %v1232, %v1360
      %v1362 = vpop.f32.mrf.mxu0
      %1363 = vdwg.mxu0
      %s1364 = scalar_lea.vmem %s4, 256
      %v1365 = vld [vmem:[%s1364] sm:$0xff]
      %v1366 = vld [vmem:[%s1364 + $0x8] sm:$0xff]
      %v1367 = vld [vmem:[%s1364 + $0x10] sm:$0xff]
      %v1368 = vld [vmem:[%s1364 + $0x18] sm:$0xff]
      %v1369 = vld [vmem:[%s1364 + $0x20] sm:$0xff]
      %v1370 = vld [vmem:[%s1364 + $0x28] sm:$0xff]
      %v1371 = vld [vmem:[%s1364 + $0x30] sm:$0xff]
      %v1372 = vld [vmem:[%s1364 + $0x38] sm:$0xff]
      %v1373 = vld [vmem:[%s1364 + $0x40] sm:$0xff]
      %v1374 = vld [vmem:[%s1364 + $0x48] sm:$0xff]
      %v1375 = vld [vmem:[%s1364 + $0x50] sm:$0xff]
      %v1376 = vld [vmem:[%s1364 + $0x58] sm:$0xff]
      %v1377 = vld [vmem:[%s1364 + $0x60] sm:$0xff]
      %v1378 = vld [vmem:[%s1364 + $0x68] sm:$0xff]
      %v1379 = vld [vmem:[%s1364 + $0x70] sm:$0xff]
      %v1380 = vld [vmem:[%s1364 + $0x78] sm:$0xff]
      %v1381 = vrot.slane %v1080, 1
      %v1382 = vrot.slane %v1081, 1
      %v1383 = vsel %vm726, %v1381, %v1382
      %v1384 = vrot.slane %v1082, 1
      %v1385 = vsel %vm726, %v1382, %v1384
      %v1405 = vunpack.c.l.b16 %v1365
      %v1406 = vunpack.c.h.b16 %v1365
      %v1407 = vunpack.c.l.b16 %v1366
      %v1408 = vunpack.c.h.b16 %v1366
      %v1409 = vunpack.c.l.b16 %v1367
      %v1410 = vunpack.c.h.b16 %v1367
      %v1411 = vunpack.c.l.b16 %v1368
      %v1412 = vunpack.c.h.b16 %v1368
      %v1413 = vunpack.c.l.b16 %v1369
      %v1414 = vunpack.c.h.b16 %v1369
      %v1415 = vunpack.c.l.b16 %v1370
      %v1416 = vunpack.c.h.b16 %v1370
      %v1417 = vunpack.c.l.b16 %v1371
      %v1418 = vunpack.c.h.b16 %v1371
      %v1419 = vunpack.c.l.b16 %v1372
      %v1420 = vunpack.c.h.b16 %v1372
      %v1421 = vunpack.c.l.b16 %v1373
      %v1422 = vunpack.c.h.b16 %v1373
      %v1423 = vunpack.c.l.b16 %v1374
      %v1424 = vunpack.c.h.b16 %v1374
      %v1425 = vunpack.c.l.b16 %v1375
      %v1426 = vunpack.c.h.b16 %v1375
      %v1427 = vunpack.c.l.b16 %v1376
      %v1428 = vunpack.c.h.b16 %v1376
      %v1429 = vunpack.c.l.b16 %v1377
      %v1430 = vunpack.c.h.b16 %v1377
      %v1431 = vunpack.c.l.b16 %v1378
      %v1432 = vunpack.c.h.b16 %v1378
      %v1433 = vunpack.c.l.b16 %v1379
      %v1434 = vunpack.c.h.b16 %v1379
      %v1435 = vunpack.c.l.b16 %v1380
      %v1436 = vunpack.c.h.b16 %v1380
      %v1437 = vpack.c.b16 %v1407, %v1405
      %v1438 = vpack.c.b16 %v1408, %v1406
      %v1439 = vpack.c.b16 %v1411, %v1409
      %v1440 = vpack.c.b16 %v1412, %v1410
      %v1441 = vpack.c.b16 %v1415, %v1413
      %v1442 = vpack.c.b16 %v1416, %v1414
      %v1443 = vpack.c.b16 %v1419, %v1417
      %v1444 = vpack.c.b16 %v1420, %v1418
      %v1445 = vpack.c.b16 %v1423, %v1421
      %v1446 = vpack.c.b16 %v1424, %v1422
      %v1447 = vpack.c.b16 %v1427, %v1425
      %v1448 = vpack.c.b16 %v1428, %v1426
      %v1449 = vpack.c.b16 %v1431, %v1429
      %v1450 = vpack.c.b16 %v1432, %v1430
      %v1451 = vpack.c.b16 %v1435, %v1433
      %v1452 = vpack.c.b16 %v1436, %v1434
      %1469 = vmatpush.bf16.msra.mxu0 %v1451
      %1470 = vmatpush.bf16.msra.mxu0 %v1449
      %1471 = vmatpush.bf16.msra.mxu0 %v1447
      %1472 = vmatpush.bf16.msra.mxu0 %v1445
      %1473 = vmatpush.bf16.msra.mxu0 %v1443
      %1474 = vmatpush.bf16.msra.mxu0 %v1441
      %1475 = vmatpush.bf16.msra.mxu0 %v1439
      %1476 = vmatpush.bf16.msra.mxu0 %v1437
      %1477 = vmatmul.bf16.gmra.mxu0 %v1383
      %v1478 = vpop.f32.mrf.mxu0
      %v1479 = vadd.f32 0.0, %v1478
      %v1480 = vpop.f32.mrf.mxu0
      %v1481 = vadd.f32 0.0, %v1480
      %1482 = vmatmul.bf16.gmra.mxu0 %v1385
      %v1483 = vpop.f32.mrf.mxu0
      %v1484 = vadd.f32 0.0, %v1483
      %v1485 = vpop.f32.mrf.mxu0
      %v1486 = vadd.f32 0.0, %v1485
      %1487 = vmatmul.bf16.gmra.mxu0 %v1384
      %v1488 = vpop.f32.mrf.mxu0
      %v1489 = vadd.f32 0.0, %v1488
      %v1490 = vpop.f32.mrf.mxu0
      %1491 = vdwg.mxu0
      %1492 = vmatpush.bf16.msra.mxu0 %v1452
      %1493 = vmatpush.bf16.msra.mxu0 %v1450
      %1494 = vmatpush.bf16.msra.mxu0 %v1448
      %1495 = vmatpush.bf16.msra.mxu0 %v1446
      %1496 = vmatpush.bf16.msra.mxu0 %v1444
      %1497 = vmatpush.bf16.msra.mxu0 %v1442
      %1498 = vmatpush.bf16.msra.mxu0 %v1440
      %1499 = vmatpush.bf16.msra.mxu0 %v1438
      %1500 = vmatmul.bf16.gmra.mxu0 %v1383
      %v1501 = vpop.f32.mrf.mxu0
      %v1502 = vadd.f32 0.0, %v1501
      %v1503 = vpop.f32.mrf.mxu0
      %v1504 = vadd.f32 0.0, %v1503
      %1505 = vmatmul.bf16.gmra.mxu0 %v1385
      %v1506 = vpop.f32.mrf.mxu0
      %v1507 = vadd.f32 0.0, %v1506
      %v1508 = vpop.f32.mrf.mxu0
      %v1509 = vadd.f32 0.0, %v1508
      %1510 = vmatmul.bf16.gmra.mxu0 %v1384
      %v1511 = vpop.f32.mrf.mxu0
      %v1512 = vadd.f32 0.0, %v1511
      %v1513 = vpop.f32.mrf.mxu0
      %1514 = vdwg.mxu0
      %v1515 = vadd.f32 %v1328, %v1479
      %v1516 = vadd.f32 %v1351, %v1502
      %v1517 = vadd.f32 %v1330, %v1481
      %v1518 = vadd.f32 %v1353, %v1504
      %v1519 = vadd.f32 %v1333, %v1484
      %v1520 = vadd.f32 %v1356, %v1507
      %v1521 = vadd.f32 %v1335, %v1486
      %v1522 = vadd.f32 %v1358, %v1509
      %v1523 = vadd.f32 %v1338, %v1489
      %v1524 = vadd.f32 %v1361, %v1512
      %v1526 = vperm.slane %v1036, 0
      %v1527 = vperm.slane %v1036, 1
      %v1530 = vadd.f32 %v1515, %v1526
      %v1531 = vadd.f32 %v1516, %v1527
      %v1532 = vadd.f32 %v1517, %v1526
      %v1533 = vadd.f32 %v1518, %v1527
      %v1534 = vadd.f32 %v1519, %v1526
      %v1535 = vadd.f32 %v1520, %v1527
      %v1536 = vadd.f32 %v1521, %v1526
      %v1537 = vadd.f32 %v1522, %v1527
      %v1538 = vadd.f32 %v1523, %v1526
      %v1539 = vadd.f32 %v1524, %v1527
      %v1540 = vmax.f32 %v1530, 0.0
      %v1541 = vmax.f32 %v1531, 0.0
      %v1542 = vmax.f32 %v1532, 0.0
      %v1543 = vmax.f32 %v1533, 0.0
      %v1544 = vmax.f32 %v1534, 0.0
      %v1545 = vmax.f32 %v1535, 0.0
      %v1546 = vmax.f32 %v1536, 0.0
      %v1547 = vmax.f32 %v1537, 0.0
      %v1548 = vmax.f32 %v1538, 0.0
      %v1549 = vmax.f32 %v1539, 0.0
      %v1550 = vmax.f32 %v1540, %v1541
      %v1551 = vmax.f32 %v1542, %v1543
      %v1552 = vmax.f32 %v1544, %v1545
      %v1553 = vmax.f32 %v1546, %v1547
      %v1554 = vmax.f32 %v1548, %v1549
      %v1555 = vpack.c.bf16 %v1551, %v1550
      %v1556 = vpack.c.bf16 %v1553, %v1552
      %v1557 = vpack.c.bf16 %v1554, %v1554
      %v1558 = vld [vmem:[%s6] sm:$0xf]
      %v1559 = vld [vmem:[%s6 + $0x4] sm:$0xf]
      %v1562 = vunpack.c.l.b16 %v1558
      %v1563 = vunpack.c.l.b16 %v1559
      %v1564 = vpack.c.b16 %v1563, %v1562
      %vm1565 = vcmask 310272
      %v1567 = vsel %vm1565, %v1564, 0
      %v1570 = vsel %vm948, %v1557, 0
      %1572 = vmatpush.bf16.msra.mxu0 0
      %1573 = vmatpush.bf16.msra.mxu0 0
      %1574 = vmatpush.bf16.msra.mxu0 0
      %1575 = vmatpush.bf16.msra.mxu0 0
      %1576 = vmatpush.bf16.msra.mxu0 0
      %1577 = vmatpush.bf16.msra.mxu0 %v1570
      %1578 = vmatpush.bf16.msra.mxu0 %v1556
      %1579 = vmatpush.bf16.msra.mxu0 %v1555
      %1580 = vmatmul.bf16.gmra.mxu0 %v1567
      %v1581 = vpop.f32.mrf.mxu0
      %v1582 = vadd.f32 0.0, %v1581
      %v1583 = vpop.f32.mrf.mxu0
      %v1584 = vadd.f32 0.0, %v1583
      %1585 = vdwg.mxu0
      %s1586 = scalar_lea.vmem %s6, 8
      %v1587 = vld [vmem:[%s1586] sm:$0xf]
      %v1588 = vld [vmem:[%s1586 + $0x4] sm:$0xf]
      %v1591 = vunpack.c.l.b16 %v1587
      %v1592 = vunpack.c.l.b16 %v1588
      %v1593 = vpack.c.b16 %v1592, %v1591
      %v1595 = vsel %vm1565, %v1593, 0
      %1597 = vmatpush.bf16.msra.mxu0 0
      %1598 = vmatpush.bf16.msra.mxu0 0
      %1599 = vmatpush.bf16.msra.mxu0 0
      %1600 = vmatpush.bf16.msra.mxu0 0
      %1601 = vmatpush.bf16.msra.mxu0 0
      %1602 = vmatpush.bf16.msra.mxu0 %v1570
      %1603 = vmatpush.bf16.msra.mxu0 %v1556
      %1604 = vmatpush.bf16.msra.mxu0 %v1555
      %1605 = vmatmul.bf16.gmra.mxu0 %v1595
      %v1606 = vpop.f32.mrf.mxu0
      %v1607 = vadd.f32 0.0, %v1606
      %v1608 = vpop.f32.mrf.mxu0
      %v1609 = vadd.f32 0.0, %v1608
      %1610 = vdwg.mxu0
      %v1611 = vmax.f32 %v1582, %v1607
      %v1612 = vmax.f32 %v1584, %v1609
      %v1613 = vpack.c.bf16 %v1612, %v1611
      %v1614 = vld [vmem:[%s7] sm:$0xf]
      %v1615 = vld [vmem:[%s7 + $0x4] sm:$0xf]
      %v1616 = vld [vmem:[%s7 + $0x8] sm:$0xf]
      %v1617 = vld [vmem:[%s7 + $0xc] sm:$0xf]
      %v1618 = vld [vmem:[%s7 + $0x10] sm:$0xf]
      %v1619 = vld [vmem:[%s7 + $0x14] sm:$0xf]
      %v1620 = vld [vmem:[%s7 + $0x18] sm:$0xf]
      %v1621 = vld [vmem:[%s7 + $0x1c] sm:$0xf]
      %v1622 = vld [vmem:[%s7 + $0x20] sm:$0xf]
      %v1623 = vld [vmem:[%s7 + $0x24] sm:$0xf]
      %v1624 = vld [vmem:[%s7 + $0x28] sm:$0xf]
      %v1625 = vld [vmem:[%s7 + $0x2c] sm:$0xf]
      %v1626 = vld [vmem:[%s7 + $0x30] sm:$0xf]
      %v1627 = vld [vmem:[%s7 + $0x34] sm:$0xf]
      %v1628 = vld [vmem:[%s7 + $0x38] sm:$0xf]
      %v1629 = vld [vmem:[%s7 + $0x3c] sm:$0xf]
      %v1646 = vunpack.c.l.b16 %v1614
      %v1647 = vunpack.c.l.b16 %v1615
      %v1648 = vunpack.c.l.b16 %v1616
      %v1649 = vunpack.c.l.b16 %v1617
      %v1650 = vunpack.c.l.b16 %v1618
      %v1651 = vunpack.c.l.b16 %v1619
      %v1652 = vunpack.c.l.b16 %v1620
      %v1653 = vunpack.c.l.b16 %v1621
      %v1654 = vunpack.c.l.b16 %v1622
      %v1655 = vunpack.c.l.b16 %v1623
      %v1656 = vunpack.c.l.b16 %v1624
      %v1657 = vunpack.c.l.b16 %v1625
      %v1658 = vunpack.c.l.b16 %v1626
      %v1659 = vunpack.c.l.b16 %v1627
      %v1660 = vunpack.c.l.b16 %v1628
      %v1661 = vunpack.c.l.b16 %v1629
      %v1662 = vpack.c.b16 %v1647, %v1646
      %v1663 = vpack.c.b16 %v1649, %v1648
      %v1664 = vpack.c.b16 %v1651, %v1650
      %v1665 = vpack.c.b16 %v1653, %v1652
      %v1666 = vpack.c.b16 %v1655, %v1654
      %v1667 = vpack.c.b16 %v1657, %v1656
      %v1668 = vpack.c.b16 %v1659, %v1658
      %v1669 = vpack.c.b16 %v1661, %v1660
      %1678 = vmatpush.bf16.msra.mxu0 %v1669
      %1679 = vmatpush.bf16.msra.mxu0 %v1668
      %1680 = vmatpush.bf16.msra.mxu0 %v1667
      %1681 = vmatpush.bf16.msra.mxu0 %v1666
      %1682 = vmatpush.bf16.msra.mxu0 %v1665
      %1683 = vmatpush.bf16.msra.mxu0 %v1664
      %1684 = vmatpush.bf16.msra.mxu0 %v1663
      %1685 = vmatpush.bf16.msra.mxu0 %v1662
      %1686 = vmatmul.bf16.gmra.mxu0 %v1613
      %v1687 = vpop.f32.mrf.mxu0
      %v1688 = vadd.f32 0.0, %v1687
      %v1689 = vpop.f32.mrf.mxu0
      %v1690 = vadd.f32 0.0, %v1689
      %1691 = vdwg.mxu0
      %v1692 = vld [vmem:[%s8] sm:$0xff]
      %v1693 = vld [vmem:[%s8 + $0x8] sm:$0xff]
      %v1694 = vmul.f32 %v1688, %v1692
      %v1695 = vmul.f32 %v1690, %v1693
      %v1696 = vld [vmem:[%s9] sm:$0xff]
      %v1697 = vld [vmem:[%s9 + $0x8] sm:$0xff]
      %vm1698 = vcmask 130048
      %v1700 = vsel %vm1698, %v1694, 0
      %v1703 = vsel %vm1698, %v1695, 0
      %1705 = vmatpush.msra.mxu0 0.0
      %1706 = vmatpush.msra.mxu0 0.0
      %1707 = vmatpush.msra.mxu0 0.0
      %1708 = vmatpush.msra.mxu0 0.0
      %1709 = vmatpush.msra.mxu0 0.0
      %1710 = vmatpush.msra.mxu0 0.0
      %1711 = vmatpush.msra.mxu0 0.0
      %1712 = vmatpush.msra.mxu0 0.0
      %1713 = vmatpush.msra.mxu0 0.0
      %1714 = vmatpush.msra.mxu0 0.0
      %1715 = vmatpush.msra.mxu0 0.0
      %1716 = vmatpush.msra.mxu0 0.0
      %1717 = vmatpush.msra.mxu0 0.0
      %1718 = vmatpush.msra.mxu0 0.0
      %1719 = vmatpush.msra.mxu0 %v1697
      %1720 = vmatpush.msra.mxu0 %v1696
      %1721 = vmatmul.f32.gmra.mxu0 %v1700
      %v1722 = vpop.f32.mrf.mxu0
      %v1723 = vadd.f32 0.0, %v1722
      %1724 = vmatmul.f32.gmra.mxu0 %v1703
      %v1725 = vpop.f32.mrf.mxu0
      %v1726 = vadd.f32 0.0, %v1725
      %1727 = vdwg.mxu0
      %v1728 = vld [vmem:[%s10] sm:$0xf]
      %v1729 = vld [vmem:[%s11] sm:$0x1]
      %v1731 = vperm.slane %v1729, 0
      %v1734 = vsel %vm1698, %v1728, 0
      %1736 = vmatpush.msra.mxu0 0.0
      %1737 = vmatpush.msra.mxu0 0.0
      %1738 = vmatpush.msra.mxu0 0.0
      %1739 = vmatpush.msra.mxu0 0.0
      %1740 = vmatpush.msra.mxu0 0.0
      %1741 = vmatpush.msra.mxu0 0.0
      %1742 = vmatpush.msra.mxu0 0.0
      %1743 = vmatpush.msra.mxu0 0.0
      %1744 = vmatpush.msra.mxu0 0.0
      %1745 = vmatpush.msra.mxu0 0.0
      %1746 = vmatpush.msra.mxu0 0.0
      %1747 = vmatpush.msra.mxu0 0.0
      %1748 = vmatpush.msra.mxu0 0.0
      %1749 = vmatpush.msra.mxu0 0.0
      %1750 = vmatpush.msra.mxu0 %v1726
      %1751 = vmatpush.msra.mxu0 %v1723
      %1752 = vmatmul.f32.gmra.mxu0 %v1734
      %v1753 = vpop.f32.mrf.mxu0
      %v1754 = vadd.f32 %v1731, %v1753
      %1755 = vdwg.mxu0
      %vm1756 = vcmask 27648
      %1757 = vst.msk [vmem:[%s413] sm:$0xf] %vm1756, %v1754
      %p1758 = scmp.lt.s32.totalorder %s23, 1
      %s1759 = scalar_select %p1758, %s23, 1
      %s1760 = smul.addr %s1759, 4
      %s1761 = scalar_lea.vmem %s12, %s1760
      // Predicated region
      $region69: #{model_forward.1} parent=67 // pred_check
        %p1762 = pneg %p298
      $region70: #{model_forward.1} parent=67 // pred_check_branch
        %1764 = sbr.rel (%p1762) target = $region72
      $region71: #{model_forward.1} parent=67 // pred_region
        _
      $region72: #{model_forward.1} parent=67 // pred_fallthru
        _
    $region68: #{model_forward.1} parent=5 // pred_fallthru
      _
    %p1765 = scmp.le.s32.totalorder 2, %s18
    // Predicated region
    $region73: #{model_forward.1} parent=5 // pred_check
      %p1766 = pneg %p1765
    $region74: #{model_forward.1} parent=5 // pred_check_branch
      %1768 = sbr.rel (%p1766) target = $region76
    $region75: #{model_forward.1} parent=5 // pred_region
      %s1769 = ssub.s32 %s18, 2
      // Predicated region
      $region77: #{model_forward.1} parent=75 // pred_check
        %p1770 = pneg %p304
      $region78: #{model_forward.1} parent=75 // pred_check_branch
        %1772 = sbr.rel (%p1770) target = $region80
      $region79: #{model_forward.1} parent=75 // pred_region
        %p1773 = scmp.lt.s32.totalorder %s24, 1
        %s1774 = scalar_select %p1773, %s24, 1
        %s1775 = smul.addr %s1774, 4
        %s1776 = scalar_lea.vmem %s12, %s1775
      $region80: #{model_forward.1} parent=75 // pred_fallthru
        _
    $region76: #{model_forward.1} parent=5 // pred_fallthru
      _
  $region6: #{model_forward.1} parent=0 // loop_footer
    %s22 = sadd.s32 1, %s18
  $region7: #{model_forward.1} parent=0 // loop_footer_branch
    %17 = sbr.rel target = $region3
  $region8: #{model_forward.1} parent=0 // loop_exit
    _

</llo_original>
